<compile_context>
chip_gen: v6e
topology: v6e:2x2x1
jax: 0.10.0
libtpu: 0.0.40
codegen_flags: <defaults>
</compile_context>

<pallas_src>
import functools
import math

import numpy as np
import jax
import jax.numpy as jnp
from jax.experimental import pallas as pl
from jax.experimental.pallas import tpu as pltpu

LANES = 128
# logit(1e-7): clamping the logit reproduces clip_by_tensor(p, 1e-7, 1-1e-7)
_LOGIT_CLIP = 16.118095


# ----------------------------------------------------------------------------
# small in-kernel math helpers
# ----------------------------------------------------------------------------
def _atan_pos(x):
    # atan for x >= 0 via minimax polynomial (max err ~2e-6); reciprocal on EUP.
    big = x > 1.0
    inv = pl.reciprocal(jnp.maximum(x, 1e-30), approx=True)
    z = jnp.where(big, inv, x)
    z2 = z * z
    p = z * (0.99997726 + z2 * (-0.33262347 + z2 * (0.19354346 + z2 * (
        -0.11643287 + z2 * (0.05265332 + z2 * (-0.01172120))))))
    return jnp.where(big, (math.pi * 0.5) - p, p)


def _bce_from_logits(z, t):
    # == -t*log(clip(sigmoid(z))) - (1-t)*log(1-clip(sigmoid(z))) with
    # clip(.,1e-7,1-1e-7): clamp the logit, then 1 exp + 1 log per element.
    zc = jnp.clip(z, -_LOGIT_CLIP, _LOGIT_CLIP)
    return jnp.log1p(jnp.exp(zc)) - t * zc


# ----------------------------------------------------------------------------
# Pallas kernel
# ----------------------------------------------------------------------------
def _make_loss_kernel(BA, num_classes, label_smoothing, ignore_threshold):
    def kernel(tgt_sref, ntgt_sref, haspos_sref,          # scalar prefetch (SMEM)
               pred_ref, meta_ref, aux_ref,               # VMEM blocks
               out_ref,                                   # (1,1,8,128) partials
               iou_sc):                                   # VMEM scratch
        b = pl.program_id(0)
        t = pl.program_id(1)

        # ---- decode predicted boxes (each plane is (S_TILE, 128)) ----------
        sx = jax.nn.sigmoid(pred_ref[0, 0])
        sy = jax.nn.sigmoid(pred_ref[0, 1])
        # clamp raw w/h logits so exp() cannot overflow to inf (NaN guard; the
        # PyTorch reference is unclamped but NaNs there anyway).
        w = jnp.clip(pred_ref[0, 2], -20.0, 20.0)
        h = jnp.clip(pred_ref[0, 3], -20.0, 20.0)

        px = sx + aux_ref[0]
        py = sy + aux_ref[1]
        pw = jnp.exp(w) * aux_ref[2]
        ph = jnp.exp(h) * aux_ref[3]

        p_x1 = px - pw * 0.5
        p_x2 = px + pw * 0.5
        p_y1 = py - ph * 0.5
        p_y2 = py + ph * 0.5
        area_p = pw * ph

        # ---- ignore mask: max IoU over the *actual* gt boxes ----------------
        # Dynamic trip count skips padded targets; per-target corners/area are
        # SMEM scalars broadcast implicitly into the vector min/max/mul.
        iou_sc[...] = jnp.zeros_like(iou_sc)
        n_t = ntgt_sref[b]

        @pl.loop(0, n_t)
        def _(ti):
            base = 5 * ti
            t_x1 = tgt_sref[b, base + 0]
            t_y1 = tgt_sref[b, base + 1]
            t_x2 = tgt_sref[b, base + 2]
            t_y2 = tgt_sref[b, base + 3]
            t_area = tgt_sref[b, base + 4]
            iw = jnp.maximum(jnp.minimum(p_x2, t_x2) - jnp.maximum(p_x1, t_x1), 0.0)
            ih = jnp.maximum(jnp.minimum(p_y2, t_y2) - jnp.maximum(p_y1, t_y1), 0.0)
            inter = iw * ih
            # exact divide here: the `> ignore_threshold` comparison should
            # match the PyTorch reference (area_p > 0 always -> union > 0).
            iou = inter / (t_area + area_p - inter)
            iou_sc[...] = jnp.maximum(iou_sc[...], iou)

        obj = meta_ref[0, 4]
        noobj = jnp.where(iou_sc[...] > ignore_threshold, 0.0, meta_ref[0, BA])

        # ---- dense conf BCE + num_pos ---------------------------------------
        bce_conf = _bce_from_logits(pred_ref[0, 4], obj)
        conf_sum = jnp.sum(bce_conf * (obj + noobj))
        npos = jnp.sum(obj)

        lane = jax.lax.broadcasted_iota(jnp.int32, (8, LANES), 1)
        out_ref[...] = jnp.where(
            lane == 0, conf_sum,
            jnp.where(lane == 1, npos, 0.0)).reshape(1, 1, 8, LANES)

        # ---- sparse CIoU + class BCE: only on tiles that contain positives --
        @pl.when(haspos_sref[b, t] > 0)
        def _():
            b2x = meta_ref[0, 0]
            b2y = meta_ref[0, 1]
            b2w = meta_ref[0, 2]
            b2h = meta_ref[0, 3]
            bls = 2.0 - meta_ref[0, BA + 1]

            b2_x1 = b2x - b2w * 0.5
            b2_x2 = b2x + b2w * 0.5
            b2_y1 = b2y - b2h * 0.5
            b2_y2 = b2y + b2h * 0.5

            ciw = jnp.maximum(jnp.minimum(p_x2, b2_x2) - jnp.maximum(p_x1, b2_x1), 0.0)
            cih = jnp.maximum(jnp.minimum(p_y2, b2_y2) - jnp.maximum(p_y1, b2_y1), 0.0)
            c_inter = ciw * cih
            c_union = jnp.maximum(area_p + b2w * b2h - c_inter, 1e-6)
            c_iou = c_inter * pl.reciprocal(c_union, approx=True)

            center_dist = (px - b2x) ** 2 + (py - b2y) ** 2
            enc_w = jnp.maximum(jnp.maximum(p_x2, b2_x2) - jnp.minimum(p_x1, b2_x1), 0.0)
            enc_h = jnp.maximum(jnp.maximum(p_y2, b2_y2) - jnp.minimum(p_y1, b2_y1), 0.0)
            enc_diag = jnp.maximum(enc_w * enc_w + enc_h * enc_h, 1e-6)
            ciou = c_iou - center_dist * pl.reciprocal(enc_diag, approx=True)

            v = (4.0 / (math.pi ** 2)) * (
                _atan_pos(pw * pl.reciprocal(jnp.maximum(ph, 1e-6), approx=True)) -
                _atan_pos(b2w * pl.reciprocal(jnp.maximum(b2h, 1e-6), approx=True))) ** 2
            alpha = v * pl.reciprocal(jnp.maximum(1.0 - c_iou + v, 1e-6), approx=True)
            ciou = ciou - alpha * v

            cls_acc = jnp.zeros_like(obj)
            for c in range(num_classes):
                tgt_c = meta_ref[0, 5 + c]
                if label_smoothing != 0.0:            # folded away at trace time
                    tgt_c = (tgt_c * (1.0 - label_smoothing)
                             + label_smoothing / num_classes)
                cls_acc = cls_acc + _bce_from_logits(pred_ref[0, 5 + c], tgt_c)

            loc_cls = jnp.sum(((1.0 - ciou) * bls + cls_acc) * obj)
            out_ref[...] = out_ref[...] + jnp.where(
                lane == 0, loc_cls, 0.0).reshape(1, 1, 8, LANES)

    return kernel


# ----------------------------------------------------------------------------
# jitted wrapper: device-side target assignment + pallas_call
# ----------------------------------------------------------------------------
@functools.partial(
    jax.jit,
    static_argnames=("l", "num_classes", "input_shape", "anchors_mask",
                     "label_smoothing", "ignore_threshold", "s_tile"))
def _origin_loss_impl(x, tgt_fixed, n_tgt, anchors_arr, *, l, num_classes,
                      input_shape, anchors_mask, label_smoothing,
                      ignore_threshold, s_tile):
    bs, _, in_h, in_w = x.shape
    mask_l = anchors_mask[l]
    na = len(mask_l)
    BA = 5 + num_classes
    hw = in_h * in_w
    R = na * hw
    maxt = tgt_fixed.shape[1]

    stride_h = input_shape[0] / in_h
    stride_w = input_shape[1] / in_w
    scaled_anchors = anchors_arr / jnp.asarray([stride_w, stride_h], jnp.float32)

    # --- cell-axis tiling: blocks of (S_TILE sublanes x 128 lanes) -----------
    S = -(-R // LANES)
    st = max(8, min((int(s_tile) // 8) * 8, -(-S // 8) * 8))
    S_pad = -(-S // st) * st
    n_tiles = S_pad // st
    r_pad = S_pad * LANES

    # --- NCHW logits -> (bs, BA, cells) lane-major ---------------------------
    pred = x.reshape(bs, na, BA, hw).transpose(0, 2, 1, 3).reshape(bs, BA, R)
    if r_pad != R:
        pred = jnp.pad(pred, ((0, 0), (0, 0), (0, r_pad - R)))
    pred = pred.reshape(bs, BA, S_pad, LANES)

    # --- aux planes: grid_x | grid_y | anchor_w | anchor_h -------------------
    gx = jnp.tile(jnp.arange(in_w, dtype=jnp.float32), na * in_h)
    gy = jnp.tile(jnp.repeat(jnp.arange(in_h, dtype=jnp.float32), in_w), na)
    sa_l = scaled_anchors[np.asarray(mask_l)]
    aw = jnp.repeat(sa_l[:, 0], hw)
    ah = jnp.repeat(sa_l[:, 1], hw)
    aux = jnp.stack([gx, gy, aw, ah], axis=0)
    if r_pad != R:
        pad_block = jnp.concatenate(
            [jnp.zeros((2, r_pad - R), jnp.float32),
             jnp.ones((2, r_pad - R), jnp.float32)], axis=0)  # unit pad anchors
        aux = jnp.concatenate([aux, pad_block], axis=1)
    aux = aux.reshape(4, S_pad, LANES)

    # --- device-side target assignment (== get_target) -----------------------
    scale = jnp.asarray([in_w, in_h, in_w, in_h, 1.0], jnp.float32)
    bt = tgt_fixed * scale                                       # (bs, maxt, 5)
    valid = jnp.arange(maxt, dtype=jnp.int32)[None, :] < n_tgt[:, None]

    tw, th = bt[..., 2], bt[..., 3]
    aw_all, ah_all = scaled_anchors[:, 0], scaled_anchors[:, 1]
    a_inter = jnp.minimum(tw[..., None], aw_all) * jnp.minimum(th[..., None], ah_all)
    a_union = tw[..., None] * th[..., None] + aw_all * ah_all - a_inter
    best_n = jnp.argmax(a_inter / a_union, axis=-1)              # (bs, maxt)

    lookup = np.full((int(anchors_arr.shape[0]),), -1, np.int32)
    for idx, m in enumerate(mask_l):
        lookup[m] = idx
    k = jnp.asarray(lookup)[best_n]
    gi = jnp.floor(bt[..., 0]).astype(jnp.int32)
    gj = jnp.floor(bt[..., 1]).astype(jnp.int32)
    gc = jnp.clip(bt[..., 4].astype(jnp.int32), 0, num_classes - 1)
    ok = valid & (k >= 0)
    r = jnp.where(ok, k * hw + gj * in_w + gi, r_pad)            # r_pad => dropped

    nbt = bs * maxt
    flat_b = jnp.broadcast_to(jnp.arange(bs, dtype=jnp.int32)[:, None],
                              (bs, maxt)).reshape(-1)
    flat_r = r.reshape(-1)
    flat_c = (5 + gc).reshape(-1)
    bls_vals = (tw * th / (in_w * in_h)).reshape(-1)

    meta = jnp.zeros((bs, BA + 2, r_pad), jnp.float32)
    meta = meta.at[:, BA, :R].set(1.0)                           # noobj init
    # fused "set" scatter: box attrs 0..3 + box_loss_scale channel
    set_chan = jnp.concatenate(
        [jnp.full((nbt,), ch, jnp.int32) for ch in (0, 1, 2, 3, BA + 1)])
    set_val = jnp.concatenate(
        [bt[..., 0].reshape(-1), bt[..., 1].reshape(-1),
         bt[..., 2].reshape(-1), bt[..., 3].reshape(-1), bls_vals])
    meta = meta.at[jnp.tile(flat_b, 5), set_chan, jnp.tile(flat_r, 5)].set(
        set_val, mode="drop")
    # fused "max" scatter: objectness + one-hot class channels
    max_chan = jnp.concatenate([jnp.full((nbt,), 4, jnp.int32), flat_c])
    meta = meta.at[jnp.tile(flat_b, 2), max_chan, jnp.tile(flat_r, 2)].max(
        1.0, mode="drop")
    # clear noobj at positive cells
    meta = meta.at[flat_b, BA, flat_r].min(0.0, mode="drop")

    haspos = (jnp.sum(meta[:, 4, :].reshape(bs, n_tiles, st * LANES), axis=-1)
              > 0).astype(jnp.int32)                             # (bs, n_tiles)
    meta = meta.reshape(bs, BA + 2, S_pad, LANES)

    # per-target [x1, y1, x2, y2, area] scalars for the ignore-IoU loop
    tx, ty = bt[..., 0], bt[..., 1]
    tgt_scal = jnp.stack([tx - tw * 0.5, ty - th * 0.5,
                          tx + tw * 0.5, ty + th * 0.5, tw * th],
                         axis=-1).reshape(bs, maxt * 5)

    kernel = _make_loss_kernel(BA, num_classes, float(label_smoothing),
                               float(ignore_threshold))

    out = pl.pallas_call(
        kernel,
        out_shape=jax.ShapeDtypeStruct((bs, n_tiles, 8, LANES), jnp.float32),
        grid_spec=pltpu.PrefetchScalarGridSpec(
            num_scalar_prefetch=3,                 # tgt scalars, n_tgt, haspos
            grid=(bs, n_tiles),
            in_specs=[
                pl.BlockSpec((1, BA, st, LANES),
                             lambda b, t, ts, nt, hp: (b, 0, t, 0)),
                pl.BlockSpec((1, BA + 2, st, LANES),
                             lambda b, t, ts, nt, hp: (b, 0, t, 0)),
                pl.BlockSpec((4, st, LANES),
                             lambda b, t, ts, nt, hp: (0, t, 0)),
            ],
            out_specs=pl.BlockSpec((1, 1, 8, LANES),
                                   lambda b, t, ts, nt, hp: (b, t, 0, 0)),
            scratch_shapes=[pltpu.VMEM((st, LANES), jnp.float32)],
        ),
        compiler_params=pltpu.CompilerParams(
            dimension_semantics=("parallel", "parallel")),
    )(tgt_scal, n_tgt, haspos, pred, meta, aux)

    loss = jnp.sum(out[:, :, 0, 0])
    num_pos = jnp.maximum(jnp.sum(out[:, :, 0, 1]), 1.0)
    return loss, num_pos


# ----------------------------------------------------------------------------
# Public wrapper reproducing originloss.forward(l, input, targets)
# ----------------------------------------------------------------------------
def origin_loss_forward(l, x_nchw, targets, anchors, num_classes, input_shape,
                        anchors_mask=((6, 7, 8), (3, 4, 5), (0, 1, 2)),
                        label_smoothing=0.0, ignore_threshold=0.5,
                        max_targets=8, s_tile=16):
    bs = int(x_nchw.shape[0])
    # Host work is only packing the ragged target lists into fixed-shape arrays.
    # MAXT is pinned to `max_targets` so the compiled kernel never changes with
    # the batch contents (no recompiles).
    # TODO(synk): images with more than `max_targets` boxes have the extras
    # truncated from the ignore-mask / target assignment.
    tgt_fixed = np.zeros((bs, max_targets, 5), np.float32)
    n_tgt = np.zeros((bs,), np.int32)
    for b, tb in enumerate(targets):
        tb = np.asarray(tb, np.float32).reshape(-1, 5)
        n = min(tb.shape[0], max_targets)
        if n:
            tgt_fixed[b, :n] = tb[:n]
        n_tgt[b] = n
    return _origin_loss_impl(
        jnp.asarray(x_nchw, jnp.float32),
        jnp.asarray(tgt_fixed), jnp.asarray(n_tgt),
        jnp.asarray(np.asarray(anchors, np.float32)),
        l=int(l), num_classes=int(num_classes),
        input_shape=tuple(int(v) for v in input_shape),
        anchors_mask=tuple(tuple(int(a) for a in m) for m in anchors_mask),
        label_smoothing=float(label_smoothing),
        ignore_threshold=float(ignore_threshold),
        s_tile=int(s_tile))


if __name__ == "__main__":
    # deterministic setup (no checkpoint loads)
    num_classes = 4
    anchors = [(4, 6), (8, 10), (12, 14), (16, 20), (24, 28),
               (32, 36), (40, 44), (48, 52), (56, 60)]
    input_shape = (64, 64)
    anchors_mask = [[6, 7, 8], [3, 4, 5], [0, 1, 2]]
    l = 0
    bs, in_h, in_w = 2, 16, 16
    channels = len(anchors_mask[l]) * (5 + num_classes)     # 27

    key = jax.random.PRNGKey(0)
    x = jax.random.normal(key, (bs, channels, in_h, in_w), dtype=jnp.float32)

    # ground-truth boxes: normalized [cx, cy, w, h, class]
    targets = [
        np.array([[0.50, 0.50, 0.80, 0.80, 1.0],
                  [0.25, 0.30, 0.70, 0.90, 2.0]], np.float32),
        np.array([[0.60, 0.40, 0.75, 0.85, 0.0]], np.float32),
    ]

    loss, num_pos = origin_loss_forward(
        l, x, targets, anchors, num_classes, input_shape,
        anchors_mask=anchors_mask, label_smoothing=0.0)
    jax.block_until_ready((loss, num_pos))
    assert np.isfinite(float(loss)) and float(num_pos) >= 1.0
    print("KERNEL_OK")
</pallas_src>

<mosaic_0001>
module attributes {stable_mosaic.version = 11 : i64} {
  func.func private @main(%arg0: i32) attributes {dimension_semantics = [#tpu.dimension_semantics<core_parallel>], iteration_bounds = array<i64: 2>, tpu.core_type = #tpu.core_type<sc_scalar_subcore>, window_params = []} {
    return
  }
}

module attributes {stable_mosaic.version = 11 : i64} {
  func.func private @main(%arg0: i32) attributes {dimension_semantics = [#tpu.dimension_semantics<core_parallel>], iteration_bounds = array<i64: 2>, tpu.core_type = #tpu.core_type<sc_scalar_subcore>, window_params = []} {
    return
  }
}

module attributes {stable_mosaic.version = 11 : i64} {
  func.func @kernel(%arg0: i32, %arg1: i32, %arg2: memref<2x40xf32, #tpu.memory_space<smem>>, %arg3: memref<2xi32, #tpu.memory_space<smem>>, %arg4: memref<2x1xi32, #tpu.memory_space<smem>>, %arg5: memref<1x9x8x128xf32, #tpu.memory_space<vmem>>, %arg6: memref<1x11x8x128xf32, #tpu.memory_space<vmem>>, %arg7: memref<4x8x128xf32, #tpu.memory_space<vmem>>, %arg8: memref<1x1x8x128xf32, #tpu.memory_space<vmem>>, %arg9: memref<8x128xf32, #tpu.memory_space<vmem>>) attributes {dimension_semantics = [#tpu.dimension_semantics<parallel>, #tpu.dimension_semantics<parallel>], iteration_bounds = array<i64: 2, 1>, scalar_prefetch = 3 : i64, scratch_operands = 1 : i64, tpu.core_type = #tpu.core_type<tc>, window_params = [{transform_indices = @transform_0, window_bounds = array<i64: 1, 9, 8, 128>}, {transform_indices = @transform_1, window_bounds = array<i64: 1, 11, 8, 128>}, {transform_indices = @transform_2, window_bounds = array<i64: 4, 8, 128>}, {transform_indices = @transform_3, window_bounds = array<i64: 1, 1, 8, 128>}]} {
    %c0 = arith.constant 0 : index
    %c0_0 = arith.constant 0 : index
    %c0_1 = arith.constant 0 : index
    %c0_2 = arith.constant 0 : index
    %0 = vector.load %arg5[%c0, %c0_0, %c0_1, %c0_2] : memref<1x9x8x128xf32, #tpu.memory_space<vmem>>, vector<1x1x8x128xf32>
    %1 = vector.shape_cast %0 : vector<1x1x8x128xf32> to vector<8x128xf32>
    %2 = arith.negf %1 : vector<8x128xf32>
    %3 = math.exp %2 : vector<8x128xf32>
    %cst = arith.constant 1.000000e+00 : f32
    %4 = vector.broadcast %cst : f32 to vector<8x128xf32>
    %5 = arith.addf %4, %3 : vector<8x128xf32>
    %6 = arith.divf %4, %5 : vector<8x128xf32>
    %c0_3 = arith.constant 0 : index
    %c1 = arith.constant 1 : index
    %c0_4 = arith.constant 0 : index
    %c0_5 = arith.constant 0 : index
    %7 = vector.load %arg5[%c0_3, %c1, %c0_4, %c0_5] : memref<1x9x8x128xf32, #tpu.memory_space<vmem>>, vector<1x1x8x128xf32>
    %8 = vector.shape_cast %7 : vector<1x1x8x128xf32> to vector<8x128xf32>
    %9 = arith.negf %8 : vector<8x128xf32>
    %10 = math.exp %9 : vector<8x128xf32>
    %cst_6 = arith.constant 1.000000e+00 : f32
    %11 = vector.broadcast %cst_6 : f32 to vector<8x128xf32>
    %12 = arith.addf %11, %10 : vector<8x128xf32>
    %13 = arith.divf %11, %12 : vector<8x128xf32>
    %c0_7 = arith.constant 0 : index
    %c2 = arith.constant 2 : index
    %c0_8 = arith.constant 0 : index
    %c0_9 = arith.constant 0 : index
    %14 = vector.load %arg5[%c0_7, %c2, %c0_8, %c0_9] : memref<1x9x8x128xf32, #tpu.memory_space<vmem>>, vector<1x1x8x128xf32>
    %15 = vector.shape_cast %14 : vector<1x1x8x128xf32> to vector<8x128xf32>
    %cst_10 = arith.constant -2.000000e+01 : f32
    %cst_11 = arith.constant 2.000000e+01 : f32
    %16 = vector.broadcast %cst_10 : f32 to vector<8x128xf32>
    %17 = arith.maximumf %16, %15 : vector<8x128xf32>
    %18 = vector.broadcast %cst_11 : f32 to vector<8x128xf32>
    %19 = arith.minimumf %18, %17 : vector<8x128xf32>
    %c0_12 = arith.constant 0 : index
    %c3 = arith.constant 3 : index
    %c0_13 = arith.constant 0 : index
    %c0_14 = arith.constant 0 : index
    %20 = vector.load %arg5[%c0_12, %c3, %c0_13, %c0_14] : memref<1x9x8x128xf32, #tpu.memory_space<vmem>>, vector<1x1x8x128xf32>
    %21 = vector.shape_cast %20 : vector<1x1x8x128xf32> to vector<8x128xf32>
    %cst_15 = arith.constant -2.000000e+01 : f32
    %cst_16 = arith.constant 2.000000e+01 : f32
    %22 = vector.broadcast %cst_15 : f32 to vector<8x128xf32>
    %23 = arith.maximumf %22, %21 : vector<8x128xf32>
    %24 = vector.broadcast %cst_16 : f32 to vector<8x128xf32>
    %25 = arith.minimumf %24, %23 : vector<8x128xf32>
    %c0_17 = arith.constant 0 : index
    %c0_18 = arith.constant 0 : index
    %c0_19 = arith.constant 0 : index
    %26 = vector.load %arg7[%c0_17, %c0_18, %c0_19] : memref<4x8x128xf32, #tpu.memory_space<vmem>>, vector<1x8x128xf32>
    %27 = vector.shape_cast %26 : vector<1x8x128xf32> to vector<8x128xf32>
    %28 = arith.addf %6, %27 : vector<8x128xf32>
    %c1_20 = arith.constant 1 : index
    %c0_21 = arith.constant 0 : index
    %c0_22 = arith.constant 0 : index
    %29 = vector.load %arg7[%c1_20, %c0_21, %c0_22] : memref<4x8x128xf32, #tpu.memory_space<vmem>>, vector<1x8x128xf32>
    %30 = vector.shape_cast %29 : vector<1x8x128xf32> to vector<8x128xf32>
    %31 = arith.addf %13, %30 : vector<8x128xf32>
    %32 = math.exp %19 : vector<8x128xf32>
    %c2_23 = arith.constant 2 : index
    %c0_24 = arith.constant 0 : index
    %c0_25 = arith.constant 0 : index
    %33 = vector.load %arg7[%c2_23, %c0_24, %c0_25] : memref<4x8x128xf32, #tpu.memory_space<vmem>>, vector<1x8x128xf32>
    %34 = vector.shape_cast %33 : vector<1x8x128xf32> to vector<8x128xf32>
    %35 = arith.mulf %32, %34 : vector<8x128xf32>
    %36 = math.exp %25 : vector<8x128xf32>
    %c3_26 = arith.constant 3 : index
    %c0_27 = arith.constant 0 : index
    %c0_28 = arith.constant 0 : index
    %37 = vector.load %arg7[%c3_26, %c0_27, %c0_28] : memref<4x8x128xf32, #tpu.memory_space<vmem>>, vector<1x8x128xf32>
    %38 = vector.shape_cast %37 : vector<1x8x128xf32> to vector<8x128xf32>
    %39 = arith.mulf %36, %38 : vector<8x128xf32>
    %cst_29 = arith.constant 5.000000e-01 : f32
    %40 = vector.broadcast %cst_29 : f32 to vector<8x128xf32>
    %41 = arith.mulf %35, %40 : vector<8x128xf32>
    %42 = arith.subf %28, %41 : vector<8x128xf32>
    %cst_30 = arith.constant 5.000000e-01 : f32
    %43 = vector.broadcast %cst_30 : f32 to vector<8x128xf32>
    %44 = arith.mulf %35, %43 : vector<8x128xf32>
    %45 = arith.addf %28, %44 : vector<8x128xf32>
    %cst_31 = arith.constant 5.000000e-01 : f32
    %46 = vector.broadcast %cst_31 : f32 to vector<8x128xf32>
    %47 = arith.mulf %39, %46 : vector<8x128xf32>
    %48 = arith.subf %31, %47 : vector<8x128xf32>
    %cst_32 = arith.constant 5.000000e-01 : f32
    %49 = vector.broadcast %cst_32 : f32 to vector<8x128xf32>
    %50 = arith.mulf %39, %49 : vector<8x128xf32>
    %51 = arith.addf %31, %50 : vector<8x128xf32>
    %52 = arith.mulf %35, %39 : vector<8x128xf32>
    %cst_33 = arith.constant 0.000000e+00 : f32
    %53 = vector.broadcast %cst_33 : f32 to vector<8x128xf32>
    %c0_34 = arith.constant 0 : index
    %c0_35 = arith.constant 0 : index
    %54 = vector.load %arg9[%c0_34, %c0_35] : memref<8x128xf32, #tpu.memory_space<vmem>>, vector<8x128xf32>
    tpu.vector_store %arg9[%c0_34, %c0_35], %53 {strides = array<i32>} : memref<8x128xf32, #tpu.memory_space<vmem>>, vector<8x128xf32>,
    %55 = arith.index_cast %arg0 : i32 to index
    %56 = memref.load %arg3[%55] : memref<2xi32, #tpu.memory_space<smem>>
    %c0_i32 = arith.constant 0 : i32
    %57 = arith.subi %56, %c0_i32 : i32
    %c1_i32 = arith.constant 1 : i32
    %c1_i32_36 = arith.constant 1 : i32
    %58 = arith.subi %c1_i32, %c1_i32_36 : i32
    %59 = arith.addi %57, %58 : i32
    %c1_i32_37 = arith.constant 1 : i32
    %60 = arith.divsi %59, %c1_i32_37 : i32
    %c1_i32_38 = arith.constant 1 : i32
    %c0_i32_39 = arith.constant 0 : i32
    %c0_i32_40 = arith.constant 0 : i32
    %61 = arith.subi %60, %c0_i32_40 : i32
    %62 = arith.addi %c0_i32_40, %61 : i32
    %c1_i32_41 = arith.constant 1 : i32
    scf.for %arg10 = %c0_i32_40 to %62 step %c1_i32_41  : i32 {
      %110 = arith.muli %arg10, %c1_i32_38 : i32
      %111 = arith.addi %c0_i32_39, %110 : i32
      %c5_i32 = arith.constant 5 : i32
      %112 = arith.muli %c5_i32, %111 : i32
      %c0_i32_69 = arith.constant 0 : i32
      %113 = arith.addi %112, %c0_i32_69 : i32
      %114 = arith.index_cast %arg0 : i32 to index
      %115 = arith.index_cast %113 : i32 to index
      %116 = memref.load %arg2[%114, %115] : memref<2x40xf32, #tpu.memory_space<smem>>
      %c1_i32_70 = arith.constant 1 : i32
      %117 = arith.addi %112, %c1_i32_70 : i32
      %118 = arith.index_cast %arg0 : i32 to index
      %119 = arith.index_cast %117 : i32 to index
      %120 = memref.load %arg2[%118, %119] : memref<2x40xf32, #tpu.memory_space<smem>>
      %c2_i32 = arith.constant 2 : i32
      %121 = arith.addi %112, %c2_i32 : i32
      %122 = arith.index_cast %arg0 : i32 to index
      %123 = arith.index_cast %121 : i32 to index
      %124 = memref.load %arg2[%122, %123] : memref<2x40xf32, #tpu.memory_space<smem>>
      %c3_i32 = arith.constant 3 : i32
      %125 = arith.addi %112, %c3_i32 : i32
      %126 = arith.index_cast %arg0 : i32 to index
      %127 = arith.index_cast %125 : i32 to index
      %128 = memref.load %arg2[%126, %127] : memref<2x40xf32, #tpu.memory_space<smem>>
      %c4_i32 = arith.constant 4 : i32
      %129 = arith.addi %112, %c4_i32 : i32
      %130 = arith.index_cast %arg0 : i32 to index
      %131 = arith.index_cast %129 : i32 to index
      %132 = memref.load %arg2[%130, %131] : memref<2x40xf32, #tpu.memory_space<smem>>
      %133 = vector.broadcast %124 : f32 to vector<8x128xf32>
      %134 = arith.minimumf %45, %133 : vector<8x128xf32>
      %135 = vector.broadcast %116 : f32 to vector<8x128xf32>
      %136 = arith.maximumf %42, %135 : vector<8x128xf32>
      %137 = arith.subf %134, %136 : vector<8x128xf32>
      %cst_71 = arith.constant 0.000000e+00 : f32
      %138 = vector.broadcast %cst_71 : f32 to vector<8x128xf32>
      %139 = arith.maximumf %137, %138 : vector<8x128xf32>
      %140 = vector.broadcast %128 : f32 to vector<8x128xf32>
      %141 = arith.minimumf %51, %140 : vector<8x128xf32>
      %142 = vector.broadcast %120 : f32 to vector<8x128xf32>
      %143 = arith.maximumf %48, %142 : vector<8x128xf32>
      %144 = arith.subf %141, %143 : vector<8x128xf32>
      %cst_72 = arith.constant 0.000000e+00 : f32
      %145 = vector.broadcast %cst_72 : f32 to vector<8x128xf32>
      %146 = arith.maximumf %144, %145 : vector<8x128xf32>
      %147 = arith.mulf %139, %146 : vector<8x128xf32>
      %148 = vector.broadcast %132 : f32 to vector<8x128xf32>
      %149 = arith.addf %148, %52 : vector<8x128xf32>
      %150 = arith.subf %149, %147 : vector<8x128xf32>
      %151 = arith.divf %147, %150 : vector<8x128xf32>
      %c0_73 = arith.constant 0 : index
      %c0_74 = arith.constant 0 : index
      %152 = vector.load %arg9[%c0_73, %c0_74] : memref<8x128xf32, #tpu.memory_space<vmem>>, vector<8x128xf32>
      %153 = arith.maximumf %152, %151 : vector<8x128xf32>
      %c0_75 = arith.constant 0 : index
      %c0_76 = arith.constant 0 : index
      %154 = vector.load %arg9[%c0_75, %c0_76] : memref<8x128xf32, #tpu.memory_space<vmem>>, vector<8x128xf32>
      tpu.vector_store %arg9[%c0_75, %c0_76], %153 {strides = array<i32>} : memref<8x128xf32, #tpu.memory_space<vmem>>, vector<8x128xf32>,
    }
    %c0_42 = arith.constant 0 : index
    %c4 = arith.constant 4 : index
    %c0_43 = arith.constant 0 : index
    %c0_44 = arith.constant 0 : index
    %63 = vector.load %arg6[%c0_42, %c4, %c0_43, %c0_44] : memref<1x11x8x128xf32, #tpu.memory_space<vmem>>, vector<1x1x8x128xf32>
    %64 = vector.shape_cast %63 : vector<1x1x8x128xf32> to vector<8x128xf32>
    %c0_45 = arith.constant 0 : index
    %c0_46 = arith.constant 0 : index
    %65 = vector.load %arg9[%c0_45, %c0_46] : memref<8x128xf32, #tpu.memory_space<vmem>>, vector<8x128xf32>
    %cst_47 = arith.constant 5.000000e-01 : f32
    %66 = vector.broadcast %cst_47 : f32 to vector<8x128xf32>
    %67 = arith.cmpf ogt, %65, %66 : vector<8x128xf32>
    %c0_48 = arith.constant 0 : index
    %c9 = arith.constant 9 : index
    %c0_49 = arith.constant 0 : index
    %c0_50 = arith.constant 0 : index
    %68 = vector.load %arg6[%c0_48, %c9, %c0_49, %c0_50] : memref<1x11x8x128xf32, #tpu.memory_space<vmem>>, vector<1x1x8x128xf32>
    %69 = vector.shape_cast %68 : vector<1x1x8x128xf32> to vector<8x128xf32>
    %cst_51 = arith.constant 0.000000e+00 : f32
    %70 = vector.broadcast %cst_51 : f32 to vector<8x128xf32>
    %71 = arith.select %67, %70, %69 : vector<8x128xi1>, vector<8x128xf32>
    %c0_52 = arith.constant 0 : index
    %c4_53 = arith.constant 4 : index
    %c0_54 = arith.constant 0 : index
    %c0_55 = arith.constant 0 : index
    %72 = vector.load %arg5[%c0_52, %c4_53, %c0_54, %c0_55] : memref<1x9x8x128xf32, #tpu.memory_space<vmem>>, vector<1x1x8x128xf32>
    %73 = vector.shape_cast %72 : vector<1x1x8x128xf32> to vector<8x128xf32>
    %cst_56 = arith.constant -16.1180954 : f32
    %cst_57 = arith.constant 16.1180954 : f32
    %74 = vector.broadcast %cst_56 : f32 to vector<8x128xf32>
    %75 = arith.maximumf %74, %73 : vector<8x128xf32>
    %76 = vector.broadcast %cst_57 : f32 to vector<8x128xf32>
    %77 = arith.minimumf %76, %75 : vector<8x128xf32>
    %78 = math.exp %77 : vector<8x128xf32>
    %79 = math.log1p %78 : vector<8x128xf32>
    %80 = arith.mulf %64, %77 : vector<8x128xf32>
    %81 = arith.subf %79, %80 : vector<8x128xf32>
    %82 = arith.addf %64, %71 : vector<8x128xf32>
    %83 = arith.mulf %81, %82 : vector<8x128xf32>
    %84 = vector.shape_cast %83 : vector<8x128xf32> to vector<1x8x128xf32>
    %cst_58 = arith.constant dense<0.000000e+00> : vector<1xf32>
    %85 = vector.multi_reduction <add>, %84, %cst_58 [1, 2] : vector<1x8x128xf32> to vector<1xf32>
    %86 = vector.shape_cast %85 : vector<1xf32> to vector<1x1x1xf32>
    %87 = vector.extract %86[0, 0, 0] : f32 from vector<1x1x1xf32>
    %88 = vector.shape_cast %64 : vector<8x128xf32> to vector<1x8x128xf32>
    %cst_59 = arith.constant dense<0.000000e+00> : vector<1xf32>
    %89 = vector.multi_reduction <add>, %88, %cst_59 [1, 2] : vector<1x8x128xf32> to vector<1xf32>
    %90 = vector.shape_cast %89 : vector<1xf32> to vector<1x1x1xf32>
    %91 = vector.extract %90[0, 0, 0] : f32 from vector<1x1x1xf32>
    %92 = tpu.iota {dimensions = array<i32: 1>} : vector<8x128xi32>
    %c0_i32_60 = arith.constant 0 : i32
    %93 = vector.broadcast %c0_i32_60 : i32 to vector<8x128xi32>
    %94 = arith.cmpi eq, %92, %93 : vector<8x128xi32>
    %c1_i32_61 = arith.constant 1 : i32
    %95 = vector.broadcast %c1_i32_61 : i32 to vector<8x128xi32>
    %96 = arith.cmpi eq, %92, %95 : vector<8x128xi32>
    %cst_62 = arith.constant 0.000000e+00 : f32
    %97 = vector.broadcast %91 : f32 to vector<8x128xf32>
    %98 = vector.broadcast %cst_62 : f32 to vector<8x128xf32>
    %99 = arith.select %96, %97, %98 : vector<8x128xi1>, vector<8x128xf32>
    %100 = vector.broadcast %87 : f32 to vector<8x128xf32>
    %101 = arith.select %94, %100, %99 : vector<8x128xi1>, vector<8x128xf32>
    %102 = vector.shape_cast %101 : vector<8x128xf32> to vector<1x1x8x128xf32>
    %c0_63 = arith.constant 0 : index
    %c0_64 = arith.constant 0 : index
    %c0_65 = arith.constant 0 : index
    %c0_66 = arith.constant 0 : index
    %103 = vector.load %arg8[%c0_63, %c0_64, %c0_65, %c0_66] : memref<1x1x8x128xf32, #tpu.memory_space<vmem>>, vector<1x1x8x128xf32>
    tpu.vector_store %arg8[%c0_63, %c0_64, %c0_65, %c0_66], %102 {strides = array<i32>} : memref<1x1x8x128xf32, #tpu.memory_space<vmem>>, vector<1x1x8x128xf32>,
    %104 = arith.index_cast %arg0 : i32 to index
    %105 = arith.index_cast %arg1 : i32 to index
    %106 = memref.load %arg4[%104, %105] : memref<2x1xi32, #tpu.memory_space<smem>>
    %c0_i32_67 = arith.constant 0 : i32
    %107 = arith.cmpi sgt, %106, %c0_i32_67 : i32
    %108 = arith.extui %107 : i1 to i32
    %c0_i32_68 = arith.constant 0 : i32
    %109 = arith.cmpi ne, %108, %c0_i32_68 : i32
    scf.if %109 {
      %c0_69 = arith.constant 0 : index
      %c0_70 = arith.constant 0 : index
      %c0_71 = arith.constant 0 : index
      %c0_72 = arith.constant 0 : index
      %110 = vector.load %arg6[%c0_69, %c0_70, %c0_71, %c0_72] : memref<1x11x8x128xf32, #tpu.memory_space<vmem>>, vector<1x1x8x128xf32>
      %111 = vector.shape_cast %110 : vector<1x1x8x128xf32> to vector<8x128xf32>
      %c0_73 = arith.constant 0 : index
      %c1_74 = arith.constant 1 : index
      %c0_75 = arith.constant 0 : index
      %c0_76 = arith.constant 0 : index
      %112 = vector.load %arg6[%c0_73, %c1_74, %c0_75, %c0_76] : memref<1x11x8x128xf32, #tpu.memory_space<vmem>>, vector<1x1x8x128xf32>
      %113 = vector.shape_cast %112 : vector<1x1x8x128xf32> to vector<8x128xf32>
      %c0_77 = arith.constant 0 : index
      %c2_78 = arith.constant 2 : index
      %c0_79 = arith.constant 0 : index
      %c0_80 = arith.constant 0 : index
      %114 = vector.load %arg6[%c0_77, %c2_78, %c0_79, %c0_80] : memref<1x11x8x128xf32, #tpu.memory_space<vmem>>, vector<1x1x8x128xf32>
      %115 = vector.shape_cast %114 : vector<1x1x8x128xf32> to vector<8x128xf32>
      %c0_81 = arith.constant 0 : index
      %c3_82 = arith.constant 3 : index
      %c0_83 = arith.constant 0 : index
      %c0_84 = arith.constant 0 : index
      %116 = vector.load %arg6[%c0_81, %c3_82, %c0_83, %c0_84] : memref<1x11x8x128xf32, #tpu.memory_space<vmem>>, vector<1x1x8x128xf32>
      %117 = vector.shape_cast %116 : vector<1x1x8x128xf32> to vector<8x128xf32>
      %c0_85 = arith.constant 0 : index
      %c10 = arith.constant 10 : index
      %c0_86 = arith.constant 0 : index
      %c0_87 = arith.constant 0 : index
      %118 = vector.load %arg6[%c0_85, %c10, %c0_86, %c0_87] : memref<1x11x8x128xf32, #tpu.memory_space<vmem>>, vector<1x1x8x128xf32>
      %119 = vector.shape_cast %118 : vector<1x1x8x128xf32> to vector<8x128xf32>
      %cst_88 = arith.constant 2.000000e+00 : f32
      %120 = vector.broadcast %cst_88 : f32 to vector<8x128xf32>
      %121 = arith.subf %120, %119 : vector<8x128xf32>
      %cst_89 = arith.constant 5.000000e-01 : f32
      %122 = vector.broadcast %cst_89 : f32 to vector<8x128xf32>
      %123 = arith.mulf %115, %122 : vector<8x128xf32>
      %124 = arith.subf %111, %123 : vector<8x128xf32>
      %cst_90 = arith.constant 5.000000e-01 : f32
      %125 = vector.broadcast %cst_90 : f32 to vector<8x128xf32>
      %126 = arith.mulf %115, %125 : vector<8x128xf32>
      %127 = arith.addf %111, %126 : vector<8x128xf32>
      %cst_91 = arith.constant 5.000000e-01 : f32
      %128 = vector.broadcast %cst_91 : f32 to vector<8x128xf32>
      %129 = arith.mulf %117, %128 : vector<8x128xf32>
      %130 = arith.subf %113, %129 : vector<8x128xf32>
      %cst_92 = arith.constant 5.000000e-01 : f32
      %131 = vector.broadcast %cst_92 : f32 to vector<8x128xf32>
      %132 = arith.mulf %117, %131 : vector<8x128xf32>
      %133 = arith.addf %113, %132 : vector<8x128xf32>
      %134 = arith.minimumf %45, %127 : vector<8x128xf32>
      %135 = arith.maximumf %42, %124 : vector<8x128xf32>
      %136 = arith.subf %134, %135 : vector<8x128xf32>
      %cst_93 = arith.constant 0.000000e+00 : f32
      %137 = vector.broadcast %cst_93 : f32 to vector<8x128xf32>
      %138 = arith.maximumf %136, %137 : vector<8x128xf32>
      %139 = arith.minimumf %51, %133 : vector<8x128xf32>
      %140 = arith.maximumf %48, %130 : vector<8x128xf32>
      %141 = arith.subf %139, %140 : vector<8x128xf32>
      %cst_94 = arith.constant 0.000000e+00 : f32
      %142 = vector.broadcast %cst_94 : f32 to vector<8x128xf32>
      %143 = arith.maximumf %141, %142 : vector<8x128xf32>
      %144 = arith.mulf %138, %143 : vector<8x128xf32>
      %145 = arith.mulf %115, %117 : vector<8x128xf32>
      %146 = arith.addf %52, %145 : vector<8x128xf32>
      %147 = arith.subf %146, %144 : vector<8x128xf32>
      %cst_95 = arith.constant 9.99999997E-7 : f32
      %148 = vector.broadcast %cst_95 : f32 to vector<8x128xf32>
      %149 = arith.maximumf %147, %148 : vector<8x128xf32>
      %150 = tpu.reciprocal %149 {approx = true} : vector<8x128xf32> -> vector<8x128xf32>
      %151 = arith.mulf %144, %150 : vector<8x128xf32>
      %152 = arith.subf %28, %111 : vector<8x128xf32>
      %153 = arith.mulf %152, %152 : vector<8x128xf32>
      %154 = arith.subf %31, %113 : vector<8x128xf32>
      %155 = arith.mulf %154, %154 : vector<8x128xf32>
      %156 = arith.addf %153, %155 : vector<8x128xf32>
      %157 = arith.maximumf %45, %127 : vector<8x128xf32>
      %158 = arith.minimumf %42, %124 : vector<8x128xf32>
      %159 = arith.subf %157, %158 : vector<8x128xf32>
      %cst_96 = arith.constant 0.000000e+00 : f32
      %160 = vector.broadcast %cst_96 : f32 to vector<8x128xf32>
      %161 = arith.maximumf %159, %160 : vector<8x128xf32>
      %162 = arith.maximumf %51, %133 : vector<8x128xf32>
      %163 = arith.minimumf %48, %130 : vector<8x128xf32>
      %164 = arith.subf %162, %163 : vector<8x128xf32>
      %cst_97 = arith.constant 0.000000e+00 : f32
      %165 = vector.broadcast %cst_97 : f32 to vector<8x128xf32>
      %166 = arith.maximumf %164, %165 : vector<8x128xf32>
      %167 = arith.mulf %161, %161 : vector<8x128xf32>
      %168 = arith.mulf %166, %166 : vector<8x128xf32>
      %169 = arith.addf %167, %168 : vector<8x128xf32>
      %cst_98 = arith.constant 9.99999997E-7 : f32
      %170 = vector.broadcast %cst_98 : f32 to vector<8x128xf32>
      %171 = arith.maximumf %169, %170 : vector<8x128xf32>
      %172 = tpu.reciprocal %171 {approx = true} : vector<8x128xf32> -> vector<8x128xf32>
      %173 = arith.mulf %156, %172 : vector<8x128xf32>
      %174 = arith.subf %151, %173 : vector<8x128xf32>
      %cst_99 = arith.constant 9.99999997E-7 : f32
      %175 = vector.broadcast %cst_99 : f32 to vector<8x128xf32>
      %176 = arith.maximumf %39, %175 : vector<8x128xf32>
      %177 = tpu.reciprocal %176 {approx = true} : vector<8x128xf32> -> vector<8x128xf32>
      %178 = arith.mulf %35, %177 : vector<8x128xf32>
      %cst_100 = arith.constant 1.000000e+00 : f32
      %179 = vector.broadcast %cst_100 : f32 to vector<8x128xf32>
      %180 = arith.cmpf ogt, %178, %179 : vector<8x128xf32>
      %cst_101 = arith.constant 1.000000e-30 : f32
      %181 = vector.broadcast %cst_101 : f32 to vector<8x128xf32>
      %182 = arith.maximumf %178, %181 : vector<8x128xf32>
      %183 = tpu.reciprocal %182 {approx = true} : vector<8x128xf32> -> vector<8x128xf32>
      %184 = arith.select %180, %183, %178 : vector<8x128xi1>, vector<8x128xf32>
      %185 = arith.mulf %184, %184 : vector<8x128xf32>
      %cst_102 = arith.constant -1.172120e-02 : f32
      %186 = vector.broadcast %cst_102 : f32 to vector<8x128xf32>
      %187 = arith.mulf %185, %186 : vector<8x128xf32>
      %cst_103 = arith.constant 0.0526533201 : f32
      %188 = vector.broadcast %cst_103 : f32 to vector<8x128xf32>
      %189 = arith.addf %188, %187 : vector<8x128xf32>
      %190 = arith.mulf %185, %189 : vector<8x128xf32>
      %cst_104 = arith.constant -0.116432868 : f32
      %191 = vector.broadcast %cst_104 : f32 to vector<8x128xf32>
      %192 = arith.addf %191, %190 : vector<8x128xf32>
      %193 = arith.mulf %185, %192 : vector<8x128xf32>
      %cst_105 = arith.constant 0.193543464 : f32
      %194 = vector.broadcast %cst_105 : f32 to vector<8x128xf32>
      %195 = arith.addf %194, %193 : vector<8x128xf32>
      %196 = arith.mulf %185, %195 : vector<8x128xf32>
      %cst_106 = arith.constant -0.332623482 : f32
      %197 = vector.broadcast %cst_106 : f32 to vector<8x128xf32>
      %198 = arith.addf %197, %196 : vector<8x128xf32>
      %199 = arith.mulf %185, %198 : vector<8x128xf32>
      %cst_107 = arith.constant 0.999977231 : f32
      %200 = vector.broadcast %cst_107 : f32 to vector<8x128xf32>
      %201 = arith.addf %200, %199 : vector<8x128xf32>
      %202 = arith.mulf %184, %201 : vector<8x128xf32>
      %cst_108 = arith.constant 1.57079637 : f32
      %203 = vector.broadcast %cst_108 : f32 to vector<8x128xf32>
      %204 = arith.subf %203, %202 : vector<8x128xf32>
      %205 = arith.select %180, %204, %202 : vector<8x128xi1>, vector<8x128xf32>
      %cst_109 = arith.constant 9.99999997E-7 : f32
      %206 = vector.broadcast %cst_109 : f32 to vector<8x128xf32>
      %207 = arith.maximumf %117, %206 : vector<8x128xf32>
      %208 = tpu.reciprocal %207 {approx = true} : vector<8x128xf32> -> vector<8x128xf32>
      %209 = arith.mulf %115, %208 : vector<8x128xf32>
      %cst_110 = arith.constant 1.000000e+00 : f32
      %210 = vector.broadcast %cst_110 : f32 to vector<8x128xf32>
      %211 = arith.cmpf ogt, %209, %210 : vector<8x128xf32>
      %cst_111 = arith.constant 1.000000e-30 : f32
      %212 = vector.broadcast %cst_111 : f32 to vector<8x128xf32>
      %213 = arith.maximumf %209, %212 : vector<8x128xf32>
      %214 = tpu.reciprocal %213 {approx = true} : vector<8x128xf32> -> vector<8x128xf32>
      %215 = arith.select %211, %214, %209 : vector<8x128xi1>, vector<8x128xf32>
      %216 = arith.mulf %215, %215 : vector<8x128xf32>
      %cst_112 = arith.constant -1.172120e-02 : f32
      %217 = vector.broadcast %cst_112 : f32 to vector<8x128xf32>
      %218 = arith.mulf %216, %217 : vector<8x128xf32>
      %cst_113 = arith.constant 0.0526533201 : f32
      %219 = vector.broadcast %cst_113 : f32 to vector<8x128xf32>
      %220 = arith.addf %219, %218 : vector<8x128xf32>
      %221 = arith.mulf %216, %220 : vector<8x128xf32>
      %cst_114 = arith.constant -0.116432868 : f32
      %222 = vector.broadcast %cst_114 : f32 to vector<8x128xf32>
      %223 = arith.addf %222, %221 : vector<8x128xf32>
      %224 = arith.mulf %216, %223 : vector<8x128xf32>
      %cst_115 = arith.constant 0.193543464 : f32
      %225 = vector.broadcast %cst_115 : f32 to vector<8x128xf32>
      %226 = arith.addf %225, %224 : vector<8x128xf32>
      %227 = arith.mulf %216, %226 : vector<8x128xf32>
      %cst_116 = arith.constant -0.332623482 : f32
      %228 = vector.broadcast %cst_116 : f32 to vector<8x128xf32>
      %229 = arith.addf %228, %227 : vector<8x128xf32>
      %230 = arith.mulf %216, %229 : vector<8x128xf32>
      %cst_117 = arith.constant 0.999977231 : f32
      %231 = vector.broadcast %cst_117 : f32 to vector<8x128xf32>
      %232 = arith.addf %231, %230 : vector<8x128xf32>
      %233 = arith.mulf %215, %232 : vector<8x128xf32>
      %cst_118 = arith.constant 1.57079637 : f32
      %234 = vector.broadcast %cst_118 : f32 to vector<8x128xf32>
      %235 = arith.subf %234, %233 : vector<8x128xf32>
      %236 = arith.select %211, %235, %233 : vector<8x128xi1>, vector<8x128xf32>
      %237 = arith.subf %205, %236 : vector<8x128xf32>
      %238 = arith.mulf %237, %237 : vector<8x128xf32>
      %cst_119 = arith.constant 0.405284733 : f32
      %239 = vector.broadcast %cst_119 : f32 to vector<8x128xf32>
      %240 = arith.mulf %239, %238 : vector<8x128xf32>
      %cst_120 = arith.constant 1.000000e+00 : f32
      %241 = vector.broadcast %cst_120 : f32 to vector<8x128xf32>
      %242 = arith.subf %241, %151 : vector<8x128xf32>
      %243 = arith.addf %242, %240 : vector<8x128xf32>
      %cst_121 = arith.constant 9.99999997E-7 : f32
      %244 = vector.broadcast %cst_121 : f32 to vector<8x128xf32>
      %245 = arith.maximumf %243, %244 : vector<8x128xf32>
      %246 = tpu.reciprocal %245 {approx = true} : vector<8x128xf32> -> vector<8x128xf32>
      %247 = arith.mulf %240, %246 : vector<8x128xf32>
      %248 = arith.mulf %247, %240 : vector<8x128xf32>
      %249 = arith.subf %174, %248 : vector<8x128xf32>
      %cst_122 = arith.constant 0.000000e+00 : f32
      %250 = vector.broadcast %cst_122 : f32 to vector<8x128xf32>
      %c0_123 = arith.constant 0 : index
      %c5 = arith.constant 5 : index
      %c0_124 = arith.constant 0 : index
      %c0_125 = arith.constant 0 : index
      %251 = vector.load %arg6[%c0_123, %c5, %c0_124, %c0_125] : memref<1x11x8x128xf32, #tpu.memory_space<vmem>>, vector<1x1x8x128xf32>
      %252 = vector.shape_cast %251 : vector<1x1x8x128xf32> to vector<8x128xf32>
      %c0_126 = arith.constant 0 : index
      %c5_127 = arith.constant 5 : index
      %c0_128 = arith.constant 0 : index
      %c0_129 = arith.constant 0 : index
      %253 = vector.load %arg5[%c0_126, %c5_127, %c0_128, %c0_129] : memref<1x9x8x128xf32, #tpu.memory_space<vmem>>, vector<1x1x8x128xf32>
      %254 = vector.shape_cast %253 : vector<1x1x8x128xf32> to vector<8x128xf32>
      %cst_130 = arith.constant -16.1180954 : f32
      %cst_131 = arith.constant 16.1180954 : f32
      %255 = vector.broadcast %cst_130 : f32 to vector<8x128xf32>
      %256 = arith.maximumf %255, %254 : vector<8x128xf32>
      %257 = vector.broadcast %cst_131 : f32 to vector<8x128xf32>
      %258 = arith.minimumf %257, %256 : vector<8x128xf32>
      %259 = math.exp %258 : vector<8x128xf32>
      %260 = math.log1p %259 : vector<8x128xf32>
      %261 = arith.mulf %252, %258 : vector<8x128xf32>
      %262 = arith.subf %260, %261 : vector<8x128xf32>
      %263 = arith.addf %250, %262 : vector<8x128xf32>
      %c0_132 = arith.constant 0 : index
      %c6 = arith.constant 6 : index
      %c0_133 = arith.constant 0 : index
      %c0_134 = arith.constant 0 : index
      %264 = vector.load %arg6[%c0_132, %c6, %c0_133, %c0_134] : memref<1x11x8x128xf32, #tpu.memory_space<vmem>>, vector<1x1x8x128xf32>
      %265 = vector.shape_cast %264 : vector<1x1x8x128xf32> to vector<8x128xf32>
      %c0_135 = arith.constant 0 : index
      %c6_136 = arith.constant 6 : index
      %c0_137 = arith.constant 0 : index
      %c0_138 = arith.constant 0 : index
      %266 = vector.load %arg5[%c0_135, %c6_136, %c0_137, %c0_138] : memref<1x9x8x128xf32, #tpu.memory_space<vmem>>, vector<1x1x8x128xf32>
      %267 = vector.shape_cast %266 : vector<1x1x8x128xf32> to vector<8x128xf32>
      %cst_139 = arith.constant -16.1180954 : f32
      %cst_140 = arith.constant 16.1180954 : f32
      %268 = vector.broadcast %cst_139 : f32 to vector<8x128xf32>
      %269 = arith.maximumf %268, %267 : vector<8x128xf32>
      %270 = vector.broadcast %cst_140 : f32 to vector<8x128xf32>
      %271 = arith.minimumf %270, %269 : vector<8x128xf32>
      %272 = math.exp %271 : vector<8x128xf32>
      %273 = math.log1p %272 : vector<8x128xf32>
      %274 = arith.mulf %265, %271 : vector<8x128xf32>
      %275 = arith.subf %273, %274 : vector<8x128xf32>
      %276 = arith.addf %263, %275 : vector<8x128xf32>
      %c0_141 = arith.constant 0 : index
      %c7 = arith.constant 7 : index
      %c0_142 = arith.constant 0 : index
      %c0_143 = arith.constant 0 : index
      %277 = vector.load %arg6[%c0_141, %c7, %c0_142, %c0_143] : memref<1x11x8x128xf32, #tpu.memory_space<vmem>>, vector<1x1x8x128xf32>
      %278 = vector.shape_cast %277 : vector<1x1x8x128xf32> to vector<8x128xf32>
      %c0_144 = arith.constant 0 : index
      %c7_145 = arith.constant 7 : index
      %c0_146 = arith.constant 0 : index
      %c0_147 = arith.constant 0 : index
      %279 = vector.load %arg5[%c0_144, %c7_145, %c0_146, %c0_147] : memref<1x9x8x128xf32, #tpu.memory_space<vmem>>, vector<1x1x8x128xf32>
      %280 = vector.shape_cast %279 : vector<1x1x8x128xf32> to vector<8x128xf32>
      %cst_148 = arith.constant -16.1180954 : f32
      %cst_149 = arith.constant 16.1180954 : f32
      %281 = vector.broadcast %cst_148 : f32 to vector<8x128xf32>
      %282 = arith.maximumf %281, %280 : vector<8x128xf32>
      %283 = vector.broadcast %cst_149 : f32 to vector<8x128xf32>
      %284 = arith.minimumf %283, %282 : vector<8x128xf32>
      %285 = math.exp %284 : vector<8x128xf32>
      %286 = math.log1p %285 : vector<8x128xf32>
      %287 = arith.mulf %278, %284 : vector<8x128xf32>
      %288 = arith.subf %286, %287 : vector<8x128xf32>
      %289 = arith.addf %276, %288 : vector<8x128xf32>
      %c0_150 = arith.constant 0 : index
      %c8 = arith.constant 8 : index
      %c0_151 = arith.constant 0 : index
      %c0_152 = arith.constant 0 : index
      %290 = vector.load %arg6[%c0_150, %c8, %c0_151, %c0_152] : memref<1x11x8x128xf32, #tpu.memory_space<vmem>>, vector<1x1x8x128xf32>
      %291 = vector.shape_cast %290 : vector<1x1x8x128xf32> to vector<8x128xf32>
      %c0_153 = arith.constant 0 : index
      %c8_154 = arith.constant 8 : index
      %c0_155 = arith.constant 0 : index
      %c0_156 = arith.constant 0 : index
      %292 = vector.load %arg5[%c0_153, %c8_154, %c0_155, %c0_156] : memref<1x9x8x128xf32, #tpu.memory_space<vmem>>, vector<1x1x8x128xf32>
      %293 = vector.shape_cast %292 : vector<1x1x8x128xf32> to vector<8x128xf32>
      %cst_157 = arith.constant -16.1180954 : f32
      %cst_158 = arith.constant 16.1180954 : f32
      %294 = vector.broadcast %cst_157 : f32 to vector<8x128xf32>
      %295 = arith.maximumf %294, %293 : vector<8x128xf32>
      %296 = vector.broadcast %cst_158 : f32 to vector<8x128xf32>
      %297 = arith.minimumf %296, %295 : vector<8x128xf32>
      %298 = math.exp %297 : vector<8x128xf32>
      %299 = math.log1p %298 : vector<8x128xf32>
      %300 = arith.mulf %291, %297 : vector<8x128xf32>
      %301 = arith.subf %299, %300 : vector<8x128xf32>
      %302 = arith.addf %289, %301 : vector<8x128xf32>
      %cst_159 = arith.constant 1.000000e+00 : f32
      %303 = vector.broadcast %cst_159 : f32 to vector<8x128xf32>
      %304 = arith.subf %303, %249 : vector<8x128xf32>
      %305 = arith.mulf %304, %121 : vector<8x128xf32>
      %306 = arith.addf %305, %302 : vector<8x128xf32>
      %307 = arith.mulf %306, %64 : vector<8x128xf32>
      %308 = vector.shape_cast %307 : vector<8x128xf32> to vector<1x8x128xf32>
      %cst_160 = arith.constant dense<0.000000e+00> : vector<1xf32>
      %309 = vector.multi_reduction <add>, %308, %cst_160 [1, 2] : vector<1x8x128xf32> to vector<1xf32>
      %310 = vector.shape_cast %309 : vector<1xf32> to vector<1x1x1xf32>
      %311 = vector.extract %310[0, 0, 0] : f32 from vector<1x1x1xf32>
      %c0_161 = arith.constant 0 : index
      %c0_162 = arith.constant 0 : index
      %c0_163 = arith.constant 0 : index
      %c0_164 = arith.constant 0 : index
      %312 = vector.load %arg8[%c0_161, %c0_162, %c0_163, %c0_164] : memref<1x1x8x128xf32, #tpu.memory_space<vmem>>, vector<1x1x8x128xf32>
      %c0_i32_165 = arith.constant 0 : i32
      %313 = vector.broadcast %c0_i32_165 : i32 to vector<8x128xi32>
      %314 = arith.cmpi eq, %92, %313 : vector<8x128xi32>
      %cst_166 = arith.constant 0.000000e+00 : f32
      %315 = vector.broadcast %311 : f32 to vector<8x128xf32>
      %316 = vector.broadcast %cst_166 : f32 to vector<8x128xf32>
      %317 = arith.select %314, %315, %316 : vector<8x128xi1>, vector<8x128xf32>
      %318 = vector.shape_cast %317 : vector<8x128xf32> to vector<1x1x8x128xf32>
      %319 = arith.addf %312, %318 : vector<1x1x8x128xf32>
      %c0_167 = arith.constant 0 : index
      %c0_168 = arith.constant 0 : index
      %c0_169 = arith.constant 0 : index
      %c0_170 = arith.constant 0 : index
      %320 = vector.load %arg8[%c0_167, %c0_168, %c0_169, %c0_170] : memref<1x1x8x128xf32, #tpu.memory_space<vmem>>, vector<1x1x8x128xf32>
      tpu.vector_store %arg8[%c0_167, %c0_168, %c0_169, %c0_170], %319 {strides = array<i32>} : memref<1x1x8x128xf32, #tpu.memory_space<vmem>>, vector<1x1x8x128xf32>,
    } else {
    }
    return
  }
  func.func @transform_0(%arg0: i32, %arg1: i32, %arg2: memref<2x40xf32, #tpu.memory_space<smem>>, %arg3: memref<2xi32, #tpu.memory_space<smem>>, %arg4: memref<2x1xi32, #tpu.memory_space<smem>>) -> (i32, i32, i32, i32) {
    %c0_i32 = arith.constant 0 : i32
    %c0_i32_0 = arith.constant 0 : i32
    %c0_i32_1 = arith.constant 0 : i32
    return %arg0, %c0_i32, %arg1, %c0_i32_0 : i32, i32, i32, i32
  }
  func.func @transform_1(%arg0: i32, %arg1: i32, %arg2: memref<2x40xf32, #tpu.memory_space<smem>>, %arg3: memref<2xi32, #tpu.memory_space<smem>>, %arg4: memref<2x1xi32, #tpu.memory_space<smem>>) -> (i32, i32, i32, i32) {
    %c0_i32 = arith.constant 0 : i32
    %c0_i32_0 = arith.constant 0 : i32
    %c0_i32_1 = arith.constant 0 : i32
    return %arg0, %c0_i32, %arg1, %c0_i32_0 : i32, i32, i32, i32
  }
  func.func @transform_2(%arg0: i32, %arg1: i32, %arg2: memref<2x40xf32, #tpu.memory_space<smem>>, %arg3: memref<2xi32, #tpu.memory_space<smem>>, %arg4: memref<2x1xi32, #tpu.memory_space<smem>>) -> (i32, i32, i32) {
    %c0_i32 = arith.constant 0 : i32
    %c0_i32_0 = arith.constant 0 : i32
    %c0_i32_1 = arith.constant 0 : i32
    return %c0_i32, %arg1, %c0_i32_0 : i32, i32, i32
  }
  func.func @transform_3(%arg0: i32, %arg1: i32, %arg2: memref<2x40xf32, #tpu.memory_space<smem>>, %arg3: memref<2xi32, #tpu.memory_space<smem>>, %arg4: memref<2x1xi32, #tpu.memory_space<smem>>) -> (i32, i32, i32, i32) {
    %c0_i32 = arith.constant 0 : i32
    %c0_i32_0 = arith.constant 0 : i32
    %c0_i32_1 = arith.constant 0 : i32
    return %arg0, %arg1, %c0_i32, %c0_i32_0 : i32, i32, i32, i32
  }
}

</mosaic_0001>

<llo_original>
// kernel: mul.34
$region0: #{mul.34}
  #allocation0 [shape = 's32[1]{0}', space=sflag, size = 0x4, scoped, tag = 'scoped memory for mul.34']
  %s0 = inlined_call_operand.vmem [shape: f32[9], index: 0, kind: input, shape index: {}]
  %s1 = inlined_call_operand.vmem [shape: f32[9], index: 1, kind: input, shape index: {}]
  %s2 = inlined_call_operand.vmem [shape: f32[9], index: 2, kind: output, shape index: {}]
  %v3 = vld [vmem:[%s0] sm:$0x1]
  %v4 = vld [vmem:[%s1] sm:$0x1]
  %5 = xla_tuple %v3, %v4
  %6 = xla_tuple %5
  %v7 = vmul.f32 %v3, %v4
  %8 = xla_tuple %v7
  %9 = vst [vmem:[%s2] sm:$0x1] %v7

// kernel: tile.40
$region0: #{tile.40}
  #allocation0 [shape = 's32[1]{0}', space=sflag, size = 0x4, scoped, tag = 'scoped memory for tile.40']
  %s0 = inlined_call_operand.vmem [shape: s32[16], index: 0, kind: input, shape index: {}]
  %s1 = inlined_call_operand.vmem [shape: s32[5,16], index: 1, kind: output, shape index: {}]
  // Predicated region
  $region2: #{tile.40} parent=0 // pred_check
    _
  $region3: #{tile.40} parent=0 // pred_check_branch
    %3 = sbr.rel (0) target = $region5
  $region4: #{tile.40} parent=0 // pred_region
    _
  $region5: #{tile.40} parent=0 // pred_fallthru
    _
  %v4 = vld [vmem:[%s0] ss:$0 sm:$0xff]
  %5 = vst [vmem:[%s1] sm:$0xff] %v4

// kernel: tile.48
$region0: #{tile.48}
  #allocation0 [shape = 's32[1]{0}', space=sflag, size = 0x4, scoped, tag = 'scoped memory for tile.48']
  %s0 = inlined_call_operand.vmem [shape: s32[16], index: 0, kind: input, shape index: {}]
  %s1 = inlined_call_operand.vmem [shape: s32[2,16], index: 1, kind: output, shape index: {}]
  // Predicated region
  $region2: #{tile.48} parent=0 // pred_check
    _
  $region3: #{tile.48} parent=0 // pred_check_branch
    %3 = sbr.rel (0) target = $region5
  $region4: #{tile.48} parent=0 // pred_region
    _
  $region5: #{tile.48} parent=0 // pred_fallthru
    _
  %v4 = vld [vmem:[%s0] ss:$0 sm:$0xff]
  %5 = vst [vmem:[%s1] sm:$0x3] %v4

// kernel: tile.30
$region0: #{tile.30}
  %s0 = inlined_call_operand.vmem [shape: f32[16,16], index: 0, kind: input, shape index: {}]
  %s1 = inlined_call_operand.vmem [shape: f32[256], index: 1, kind: output, shape index: {}]
  $region1: #{tile.30} parent=0
    #allocation0 [shape = 'u8[4096]{0}', space=vmem, size = 0x1000, scoped, tag = 'scoped mem for output reshape']
    %s2 = smov 3
    %v3 = vld [vmem:[%s0] ss:$8 sm:%s2]
    %vm4 = vcmask 130048
    %5 = vst.msk [vmem:[#allocation0] sm:$0x3] %vm4, %v3
    %s6 = scalar_lea.vmem %s0, 7
    %s7 = smov 3
    %v8 = vld [vmem:[%s6] ss:$8 sm:%s7]
    %9 = vrot.lane.b32.xlu0 %v8, 112
    %v10 = vpop.permute.xlu0 %9
    %vm11 = vcmask 1048448
    %12 = vst.msk [vmem:[#allocation0] sm:$0x3] %vm11, %v10
    %s13 = scalar_lea.vmem %s0, 6
    %s14 = smov 3
    %v15 = vld [vmem:[%s13] ss:$8 sm:%s14]
    %16 = vrot.lane.b32.xlu0 %v15, 96
    %v17 = vpop.permute.xlu0 %16
    %vm18 = vcmask 917248
    %19 = vst.msk [vmem:[#allocation0] sm:$0x3] %vm18, %v17
    %s20 = scalar_lea.vmem %s0, 5
    %s21 = smov 3
    %v22 = vld [vmem:[%s20] ss:$8 sm:%s21]
    %23 = vrot.lane.b32.xlu0 %v22, 80
    %v24 = vpop.permute.xlu0 %23
    %vm25 = vcmask 786048
    %26 = vst.msk [vmem:[#allocation0] sm:$0x3] %vm25, %v24
    %s27 = scalar_lea.vmem %s0, 4
    %s28 = smov 3
    %v29 = vld [vmem:[%s27] ss:$8 sm:%s28]
    %30 = vrot.lane.b32.xlu0 %v29, 64
    %v31 = vpop.permute.xlu0 %30
    %vm32 = vcmask 654848
    %33 = vst.msk [vmem:[#allocation0] sm:$0x3] %vm32, %v31
    %s34 = scalar_lea.vmem %s0, 3
    %s35 = smov 3
    %v36 = vld [vmem:[%s34] ss:$8 sm:%s35]
    %37 = vrot.lane.b32.xlu0 %v36, 48
    %v38 = vpop.permute.xlu0 %37
    %vm39 = vcmask 523648
    %40 = vst.msk [vmem:[#allocation0] sm:$0x3] %vm39, %v38
    %s41 = scalar_lea.vmem %s0, 2
    %s42 = smov 3
    %v43 = vld [vmem:[%s41] ss:$8 sm:%s42]
    %44 = vrot.lane.b32.xlu0 %v43, 32
    %v45 = vpop.permute.xlu0 %44
    %vm46 = vcmask 392448
    %47 = vst.msk [vmem:[#allocation0] sm:$0x3] %vm46, %v45
    %s48 = scalar_lea.vmem %s0, 1
    %s49 = smov 3
    %v50 = vld [vmem:[%s48] ss:$8 sm:%s49]
    %51 = vrot.lane.b32.xlu0 %v50, 16
    %v52 = vpop.permute.xlu0 %51
    %vm53 = vcmask 261248
    %54 = vst.msk [vmem:[#allocation0] sm:$0x3] %vm53, %v52
    %s56 = sshll.u32 1, 2
    %s57 = ssub.s32 %s56, 1
    %v59 = vld [vmem:[#allocation0] sm:%s57]
    %s60 = sshll.u32 1, 2
    %s61 = ssub.s32 %s60, 1
    %62 = vst [vmem:[%s1] sm:%s61] %v59

// kernel: tile.32
$region0: #{tile.32}
  %s0 = inlined_call_operand.vmem [shape: f32[48,16], index: 0, kind: input, shape index: {}]
  %s1 = inlined_call_operand.vmem [shape: f32[1,768], index: 1, kind: output, shape index: {}]
  $region1: #{tile.32} parent=0
    #allocation0 [shape = 'u8[24576]{0}', space=vmem, size = 0x6000, scoped, tag = 'scoped mem for output reshape']
    %v2 = vld [vmem:[%s0] ss:$8 sm:$0xf]
    %s3 = smov 48
    %v4 = vld [vmem:[%s0] ss:$8 sm:%s3]
    %vm5 = vcmask 1045508
    %v6 = vsel %vm5, %v4, %v2
    %vm7 = vcmask 130048
    %8 = vst.msk [vmem:[#allocation0] ss:$8 sm:$0xf] %vm7, %v6
    %9 = vst.msk [vmem:[#allocation0] ss:$8 sm:$0x30] %vm7, %v6
    %s10 = scalar_lea.vmem %s0, 7
    %v11 = vld [vmem:[%s10] ss:$8 sm:$0xf]
    %s12 = scalar_lea.vmem %s0, 7
    %s13 = smov 48
    %v14 = vld [vmem:[%s12] ss:$8 sm:%s13]
    %vm15 = vcmask 1045508
    %v16 = vsel %vm15, %v14, %v11
    %17 = vrot.lane.b32.xlu0 %v16, 112
    %v18 = vpop.permute.xlu0 %17
    %vm19 = vcmask 1048448
    %20 = vst.msk [vmem:[#allocation0] ss:$8 sm:$0xf] %vm19, %v18
    %21 = vst.msk [vmem:[#allocation0] ss:$8 sm:$0x30] %vm19, %v18
    %s22 = scalar_lea.vmem %s0, 6
    %v23 = vld [vmem:[%s22] ss:$8 sm:$0xf]
    %s24 = scalar_lea.vmem %s0, 6
    %s25 = smov 48
    %v26 = vld [vmem:[%s24] ss:$8 sm:%s25]
    %vm27 = vcmask 1045508
    %v28 = vsel %vm27, %v26, %v23
    %29 = vrot.lane.b32.xlu0 %v28, 96
    %v30 = vpop.permute.xlu0 %29
    %vm31 = vcmask 917248
    %32 = vst.msk [vmem:[#allocation0] ss:$8 sm:$0xf] %vm31, %v30
    %33 = vst.msk [vmem:[#allocation0] ss:$8 sm:$0x30] %vm31, %v30
    %s34 = scalar_lea.vmem %s0, 5
    %v35 = vld [vmem:[%s34] ss:$8 sm:$0xf]
    %s36 = scalar_lea.vmem %s0, 5
    %s37 = smov 48
    %v38 = vld [vmem:[%s36] ss:$8 sm:%s37]
    %vm39 = vcmask 1045508
    %v40 = vsel %vm39, %v38, %v35
    %41 = vrot.lane.b32.xlu0 %v40, 80
    %v42 = vpop.permute.xlu0 %41
    %vm43 = vcmask 786048
    %44 = vst.msk [vmem:[#allocation0] ss:$8 sm:$0xf] %vm43, %v42
    %45 = vst.msk [vmem:[#allocation0] ss:$8 sm:$0x30] %vm43, %v42
    %s46 = scalar_lea.vmem %s0, 4
    %v47 = vld [vmem:[%s46] ss:$8 sm:$0xf]
    %s48 = scalar_lea.vmem %s0, 4
    %s49 = smov 48
    %v50 = vld [vmem:[%s48] ss:$8 sm:%s49]
    %vm51 = vcmask 1045508
    %v52 = vsel %vm51, %v50, %v47
    %53 = vrot.lane.b32.xlu0 %v52, 64
    %v54 = vpop.permute.xlu0 %53
    %vm55 = vcmask 654848
    %56 = vst.msk [vmem:[#allocation0] ss:$8 sm:$0xf] %vm55, %v54
    %57 = vst.msk [vmem:[#allocation0] ss:$8 sm:$0x30] %vm55, %v54
    %s58 = scalar_lea.vmem %s0, 3
    %v59 = vld [vmem:[%s58] ss:$8 sm:$0xf]
    %s60 = scalar_lea.vmem %s0, 3
    %s61 = smov 48
    %v62 = vld [vmem:[%s60] ss:$8 sm:%s61]
    %vm63 = vcmask 1045508
    %v64 = vsel %vm63, %v62, %v59
    %65 = vrot.lane.b32.xlu0 %v64, 48
    %v66 = vpop.permute.xlu0 %65
    %vm67 = vcmask 523648
    %68 = vst.msk [vmem:[#allocation0] ss:$8 sm:$0xf] %vm67, %v66
    %69 = vst.msk [vmem:[#allocation0] ss:$8 sm:$0x30] %vm67, %v66
    %s70 = scalar_lea.vmem %s0, 2
    %v71 = vld [vmem:[%s70] ss:$8 sm:$0xf]
    %s72 = scalar_lea.vmem %s0, 2
    %s73 = smov 48
    %v74 = vld [vmem:[%s72] ss:$8 sm:%s73]
    %vm75 = vcmask 1045508
    %v76 = vsel %vm75, %v74, %v71
    %77 = vrot.lane.b32.xlu0 %v76, 32
    %v78 = vpop.permute.xlu0 %77
    %vm79 = vcmask 392448
    %80 = vst.msk [vmem:[#allocation0] ss:$8 sm:$0xf] %vm79, %v78
    %81 = vst.msk [vmem:[#allocation0] ss:$8 sm:$0x30] %vm79, %v78
    %s82 = scalar_lea.vmem %s0, 1
    %v83 = vld [vmem:[%s82] ss:$8 sm:$0xf]
    %s84 = scalar_lea.vmem %s0, 1
    %s85 = smov 48
    %v86 = vld [vmem:[%s84] ss:$8 sm:%s85]
    %vm87 = vcmask 1045508
    %v88 = vsel %vm87, %v86, %v83
    %89 = vrot.lane.b32.xlu0 %v88, 16
    %v90 = vpop.permute.xlu0 %89
    %vm91 = vcmask 261248
    %92 = vst.msk [vmem:[#allocation0] ss:$8 sm:$0xf] %vm91, %v90
    %93 = vst.msk [vmem:[#allocation0] ss:$8 sm:$0x30] %vm91, %v90
    %s95 = sshll.u32 1, 1
    %s96 = ssub.s32 %s95, 1
    %v98 = vld [vmem:[#allocation0] sm:%s96]
    %s99 = sshll.u32 1, 1
    %s100 = ssub.s32 %s99, 1
    %101 = vst [vmem:[%s1] sm:%s100] %v98
    %s102 = scalar_lea.vmem [#allocation0], 8
    %v103 = vld [vmem:[%s102] sm:%s96]
    %s104 = sshll.u32 1, 1
    %s105 = ssub.s32 %s104, 1
    %s106 = scalar_lea.vmem %s1, 1
    %107 = vst [vmem:[%s106] sm:%s105] %v103
    %s108 = scalar_lea.vmem [#allocation0], 16
    %v109 = vld [vmem:[%s108] sm:%s96]
    %s110 = sshll.u32 1, 1
    %s111 = ssub.s32 %s110, 1
    %s112 = smul.addr 1, 2
    %s113 = scalar_lea.vmem %s1, %s112
    %114 = vst [vmem:[%s113] sm:%s111] %v109
    %s115 = scalar_lea.vmem [#allocation0], 24
    %v116 = vld [vmem:[%s115] sm:%s96]
    %s117 = sshll.u32 1, 1
    %s118 = ssub.s32 %s117, 1
    %s119 = smul.addr 1, 3
    %s120 = scalar_lea.vmem %s1, %s119
    %121 = vst [vmem:[%s120] sm:%s118] %v116
    %s122 = scalar_lea.vmem [#allocation0], 32
    %v123 = vld [vmem:[%s122] sm:%s96]
    %s124 = sshll.u32 1, 1
    %s125 = ssub.s32 %s124, 1
    %s126 = smul.addr 1, 4
    %s127 = scalar_lea.vmem %s1, %s126
    %128 = vst [vmem:[%s127] sm:%s125] %v123
    %s129 = scalar_lea.vmem [#allocation0], 40
    %v130 = vld [vmem:[%s129] sm:%s96]
    %s131 = sshll.u32 1, 1
    %s132 = ssub.s32 %s131, 1
    %s133 = smul.addr 1, 5
    %s134 = scalar_lea.vmem %s1, %s133
    %135 = vst [vmem:[%s134] sm:%s132] %v130

// kernel: _origin_loss_impl.1
$region0: #{_origin_loss_impl.1}
  #allocation0 [shape = 'u32[]', space=smem, size = 0x4, offset = 0x4, fixed_abs, tag = 'smem constant byte address 0x4 - core index']
  #allocation1 [shape = 'u32[144,128]{1,0:T(1,128)}', space=vmem, size = 0x12000, scoped, tag = 'internal scratch']
  #allocation2 [shape = 'f32[8,128]{1,0:T(8,128)}', space=vmem, size = 0x1000, scoped, tag = 'scratch operand']
  #allocation3 [shape = 's32[1]{0}', space=sflag, size = 0x4, scoped, tag = 'scoped memory for _origin_loss_impl.1']
  #allocation4 [shape = 'u8[1024]{0}', space=smem, size = 0x400, scoped, tag = 'prefetched SMEM operand 0']
  #allocation5 [shape = 'u8[512]{0}', space=smem, size = 0x200, scoped, tag = 'prefetched SMEM operand 1']
  #allocation6 [shape = 'u8[1024]{0}', space=smem, size = 0x400, scoped, tag = 'prefetched SMEM operand 2']
  %s0 = inlined_call_operand.vmem [shape: f32[2,40], index: 0, kind: input, shape index: {}]
  %s1 = inlined_call_operand.vmem [shape: s32[2], index: 1, kind: input, shape index: {}]
  %s2 = inlined_call_operand.vmem [shape: s32[2,1], index: 2, kind: input, shape index: {}]
  %s3 = inlined_call_operand.vmem [shape: f32[2,9,8,128], index: 3, kind: input, shape index: {}]
  %s4 = inlined_call_operand.vmem [shape: f32[2,11,8,128], index: 4, kind: input, shape index: {}]
  %s5 = inlined_call_operand.vmem [shape: f32[4,8,128], index: 5, kind: input, shape index: {}]
  %s6 = inlined_call_operand.vmem [shape: f32[2,1,8,128], index: 6, kind: output, shape index: {}]
  %s7 = sld [smem:[#allocation0]]
  $region56: #{_origin_loss_impl.1} parent=0
    _
  %s9 = ssub.s32 1, %s7
  %s10 = scalar_select 0, %s9, %s7
  %s11 = sshll.u32 %s0, 4
  %s12 = int_to_ptr.vmem [resolvable:$true] %s11
  %14 = dma.vmem_to_smem %s12, 32, [#allocation4], [#allocation3]
  %s15 = sshll.u32 %s1, 4
  %s16 = int_to_ptr.vmem [resolvable:$true] %s15
  %18 = dma.vmem_to_smem %s16, 16, [#allocation5], [#allocation3]
  %s19 = sshll.u32 %s2, 4
  %s20 = int_to_ptr.vmem [resolvable:$true] %s19
  %22 = dma.vmem_to_smem %s20, 32, [#allocation6], [#allocation3]
  %23 = dma.done [#allocation3], 80
  %24 = sfence
  loop: start=0, step=1, limit=4
  $region2: #{_origin_loss_impl.1} parent=0 // loop_pre_header
    _
  $region3: #{_origin_loss_impl.1} parent=0 // loop_header
    %s26 = sphi 0, %s30
    %p27 = scmp.ge.s32.totalorder %s26, 4
    %s33 = sphi 0, %s45
    %s34 = sphi 0, %s41
    %s35 = sphi 0, %s33
    %s36 = sphi 0, %s34
    %s37 = sphi 0, %s35
    %s38 = sphi 0, %s36
    %s50 = sphi 0, %s52
    %s53 = sphi 0, %s50
    %s54 = sphi 0, %s53
    %s70 = sphi 0, %s54
    %s78 = sphi 0, %s80
    %s81 = sphi 0, %s78
    %s82 = sphi 0, %s81
    %s98 = sphi 0, %s82
    %s104 = sphi 0, %s106
    %s107 = sphi 0, %s104
    %s108 = sphi 0, %s107
    %s124 = sphi 0, %s108
    %s132 = sphi 0, %s134
    %s135 = sphi 0, %s132
    %s136 = sphi 0, %s135
    %s152 = sphi 0, %s136
  $region4: #{_origin_loss_impl.1} parent=0 // loop_header_branch
    %29 = sbr.rel (%p27) target = $region8
  $region5: #{_origin_loss_impl.1} parent=0 // loop_body
    %s31 = ssub.s32 %s26, 1
    %s32 = ssub.s32 %s26, 2
    %s39 = sadd.s32 1, %s34
    %p40 = scmp.ge.s32.totalorder %s39, 1
    %s41 = scalar_select %p40, 0, %s39
    %s42 = sadd.s32 1, %s33
    %s43 = scalar_select %p40, %s42, %s33
    %p44 = scmp.ge.s32.totalorder %s43, 2
    %s45 = scalar_select %p44, 0, %s43
    %s46 = ssub.s32 %s33, %s45
    %s47 = ssub.s32 %s34, %s41
    %s48 = sor.u32 %s46, %s47
    %p49 = scmp.eq.s32.totalorder %s48, 0
    %s51 = sadd.s32 %s50, 1
    %s52 = scalar_select %p49, %s50, %s51
    %p55 = pneg %p49
    %p56 = scmp.eq.s32.totalorder %s26, 1
    %p57 = por %p55, %p56
    %p58 = scmp.ne.s32.totalorder %s50, %s53
    %p59 = scmp.eq.s32.totalorder %s26, 0
    %p60 = por %p58, %p59
    %p61 = scmp.ne.s32.totalorder %s50, %s53
    %p62 = scmp.eq.s32.totalorder %s31, 1
    %p63 = por %p61, %p62
    %p64 = scmp.ne.s32.totalorder %s53, %s54
    %p65 = scmp.eq.s32.totalorder %s31, 0
    %p66 = por %p64, %p65
    %p67 = scmp.ne.s32.totalorder %s53, %s54
    %p68 = scmp.eq.s32.totalorder %s32, 1
    %p69 = por %p67, %p68
    %p71 = scmp.ne.s32.totalorder %s54, %s70
    %p72 = scmp.eq.s32.totalorder %s32, 0
    %p73 = por %p71, %p72
    %s74 = ssub.s32 %s33, %s45
    %s75 = ssub.s32 %s34, %s41
    %s76 = sor.u32 %s74, %s75
    %p77 = scmp.eq.s32.totalorder %s76, 0
    %s79 = sadd.s32 %s78, 1
    %s80 = scalar_select %p77, %s78, %s79
    %p83 = pneg %p77
    %p84 = scmp.eq.s32.totalorder %s26, 1
    %p85 = por %p83, %p84
    %p86 = scmp.ne.s32.totalorder %s78, %s81
    %p87 = scmp.eq.s32.totalorder %s26, 0
    %p88 = por %p86, %p87
    %p89 = scmp.ne.s32.totalorder %s78, %s81
    %p90 = scmp.eq.s32.totalorder %s31, 1
    %p91 = por %p89, %p90
    %p92 = scmp.ne.s32.totalorder %s81, %s82
    %p93 = scmp.eq.s32.totalorder %s31, 0
    %p94 = por %p92, %p93
    %p95 = scmp.ne.s32.totalorder %s81, %s82
    %p96 = scmp.eq.s32.totalorder %s32, 1
    %p97 = por %p95, %p96
    %p99 = scmp.ne.s32.totalorder %s82, %s98
    %p100 = scmp.eq.s32.totalorder %s32, 0
    %p101 = por %p99, %p100
    %s102 = ssub.s32 %s34, %s41
    %p103 = scmp.eq.s32.totalorder %s102, 0
    %s105 = sadd.s32 %s104, 1
    %s106 = scalar_select %p103, %s104, %s105
    %p109 = pneg %p103
    %p110 = scmp.eq.s32.totalorder %s26, 1
    %p111 = por %p109, %p110
    %p112 = scmp.ne.s32.totalorder %s104, %s107
    %p113 = scmp.eq.s32.totalorder %s26, 0
    %p114 = por %p112, %p113
    %p115 = scmp.ne.s32.totalorder %s104, %s107
    %p116 = scmp.eq.s32.totalorder %s31, 1
    %p117 = por %p115, %p116
    %p118 = scmp.ne.s32.totalorder %s107, %s108
    %p119 = scmp.eq.s32.totalorder %s31, 0
    %p120 = por %p118, %p119
    %p121 = scmp.ne.s32.totalorder %s107, %s108
    %p122 = scmp.eq.s32.totalorder %s32, 1
    %p123 = por %p121, %p122
    %p125 = scmp.ne.s32.totalorder %s108, %s124
    %p126 = scmp.eq.s32.totalorder %s32, 0
    %p127 = por %p125, %p126
    %s128 = ssub.s32 %s33, %s45
    %s129 = ssub.s32 %s34, %s41
    %s130 = sor.u32 %s128, %s129
    %p131 = scmp.eq.s32.totalorder %s130, 0
    %s133 = sadd.s32 %s132, 1
    %s134 = scalar_select %p131, %s132, %s133
    %p137 = pneg %p131
    %p138 = scmp.eq.s32.totalorder %s26, 1
    %p139 = por %p137, %p138
    %p140 = scmp.ne.s32.totalorder %s132, %s135
    %p141 = scmp.eq.s32.totalorder %s26, 0
    %p142 = por %p140, %p141
    %p143 = scmp.ne.s32.totalorder %s132, %s135
    %p144 = scmp.eq.s32.totalorder %s31, 1
    %p145 = por %p143, %p144
    %p146 = scmp.ne.s32.totalorder %s135, %s136
    %p147 = scmp.eq.s32.totalorder %s31, 0
    %p148 = por %p146, %p147
    %p149 = scmp.ne.s32.totalorder %s135, %s136
    %p150 = scmp.eq.s32.totalorder %s32, 1
    %p151 = por %p149, %p150
    %p153 = scmp.ne.s32.totalorder %s136, %s152
    %p154 = scmp.eq.s32.totalorder %s32, 0
    %p155 = por %p153, %p154
    %p156 = scmp.le.s32.totalorder 1, %s26
    %p157 = scmp.lt.s32.totalorder %s26, 3
    %p158 = pnand %p156, %p157
    %p159 = pneg %p158
    // Predicated region
    $region9: #{_origin_loss_impl.1} parent=5 // pred_check
      _
    $region10: #{_origin_loss_impl.1} parent=5 // pred_check_branch
      %161 = sbr.rel (%p158) target = $region12
    $region11: #{_origin_loss_impl.1} parent=5 // pred_region
      %s162 = ssub.s32 %s26, 1
      // Predicated region
      $region13: #{_origin_loss_impl.1} parent=11 // pred_check
        %p163 = pneg %p120
      $region14: #{_origin_loss_impl.1} parent=11 // pred_check_branch
        %165 = sbr.rel (%p163) target = $region16
      $region15: #{_origin_loss_impl.1} parent=11 // pred_region
        %p166 = scmp.lt.s32.totalorder %s36, 0
        %s167 = scalar_select %p166, %s36, 0
        %s168 = smul.addr %s167, 8
        %s169 = scalar_lea.vmem %s5, %s168
      $region16: #{_origin_loss_impl.1} parent=11 // pred_fallthru
        _
    $region12: #{_origin_loss_impl.1} parent=5 // pred_fallthru
      _
    %p170 = scmp.lt.s32.totalorder %s26, 2
    // Predicated region
    $region17: #{_origin_loss_impl.1} parent=5 // pred_check
      %p171 = pneg %p170
    $region18: #{_origin_loss_impl.1} parent=5 // pred_check_branch
      %173 = sbr.rel (%p171) target = $region20
    $region19: #{_origin_loss_impl.1} parent=5 // pred_region
      // Predicated region
      $region21: #{_origin_loss_impl.1} parent=19 // pred_check
        %p174 = pneg %p60
      $region22: #{_origin_loss_impl.1} parent=19 // pred_check_branch
        %176 = sbr.rel (%p174) target = $region24
      $region23: #{_origin_loss_impl.1} parent=19 // pred_region
        %p177 = scmp.lt.s32.totalorder %s33, 1
        %s178 = scalar_select %p177, %s33, 1
        %p179 = scmp.lt.s32.totalorder %s34, 0
        %s180 = scalar_select %p179, %s34, 0
        %s181 = smul.addr %s178, 9
        %s182 = sadd.s32 %s180, %s181
        %s183 = smul.addr %s182, 8
        %s184 = scalar_lea.vmem %s3, %s183
      $region24: #{_origin_loss_impl.1} parent=19 // pred_fallthru
        _
      // Predicated region
      $region25: #{_origin_loss_impl.1} parent=19 // pred_check
        %p185 = pneg %p88
      $region26: #{_origin_loss_impl.1} parent=19 // pred_check_branch
        %187 = sbr.rel (%p185) target = $region28
      $region27: #{_origin_loss_impl.1} parent=19 // pred_region
        %p188 = scmp.lt.s32.totalorder %s33, 1
        %s189 = scalar_select %p188, %s33, 1
        %p190 = scmp.lt.s32.totalorder %s34, 0
        %s191 = scalar_select %p190, %s34, 0
        %s192 = smul.addr %s189, 11
        %s193 = sadd.s32 %s191, %s192
        %s194 = smul.addr %s193, 8
        %s195 = scalar_lea.vmem %s4, %s194
      $region28: #{_origin_loss_impl.1} parent=19 // pred_fallthru
        _
    $region20: #{_origin_loss_impl.1} parent=5 // pred_fallthru
      _
    %p196 = scmp.le.s32.totalorder 1, %s26
    %p197 = scmp.lt.s32.totalorder %s26, 3
    %p198 = pnand %p196, %p197
    %p199 = pneg %p198
    // Predicated region
    $region29: #{_origin_loss_impl.1} parent=5 // pred_check
      _
    $region30: #{_origin_loss_impl.1} parent=5 // pred_check_branch
      %201 = sbr.rel (%p198) target = $region32
    $region31: #{_origin_loss_impl.1} parent=5 // pred_region
      %s202 = ssub.s32 %s26, 1
      %p203 = scmp.lt.s32.totalorder %s35, 1
      %s204 = scalar_select %p203, %s35, 1
      %p205 = scmp.lt.s32.totalorder %s36, 0
      %s206 = scalar_select %p205, %s36, 0
      %s207 = smul.addr %s204, 9
      %s208 = sadd.s32 %s206, %s207
      %s209 = smul.addr %s208, 8
      %s210 = scalar_lea.vmem %s3, %s209
      %p211 = pneg %p66
      %p212 = pneg %p63
      %p213 = scmp.lt.s32.totalorder %s35, 1
      %s214 = scalar_select %p213, %s35, 1
      %p215 = scmp.lt.s32.totalorder %s36, 0
      %s216 = scalar_select %p215, %s36, 0
      %s217 = smul.addr %s214, 11
      %s218 = sadd.s32 %s216, %s217
      %s219 = smul.addr %s218, 8
      %s220 = scalar_lea.vmem %s4, %s219
      %p221 = pneg %p94
      %p222 = pneg %p91
      %p223 = scmp.lt.s32.totalorder %s36, 0
      %s224 = scalar_select %p223, %s36, 0
      %s225 = smul.addr %s224, 8
      %s226 = scalar_lea.vmem %s5, %s225
      %p227 = pneg %p120
      %p228 = pneg %p117
      %p229 = pneg %p148
      %p230 = pneg %p145
      %p231 = scmp.lt.s32.totalorder %s35, 1
      %s232 = scalar_select %p231, %s35, 1
      %p233 = scmp.lt.s32.totalorder %s36, 0
      %s234 = scalar_select %p233, %s36, 0
      %s235 = sadd.s32 %s234, %s232
      %s236 = smul.addr %s235, 8
      %s237 = scalar_lea.vmem %s6, %s236
      %p238 = scmp.lt.s32.totalorder %s35, 1
      %s239 = scalar_select %p238, %s35, 1
      %p240 = scmp.lt.s32.totalorder %s36, 0
      %s241 = scalar_select %p240, %s36, 0
      %s242 = smul.addr %s239, 9
      %s243 = sadd.s32 %s241, %s242
      %s244 = smul.addr %s243, 8
      %s245 = scalar_lea.vmem %s3, %s244
      %p246 = scmp.lt.s32.totalorder %s35, 1
      %s247 = scalar_select %p246, %s35, 1
      %p248 = scmp.lt.s32.totalorder %s36, 0
      %s249 = scalar_select %p248, %s36, 0
      %s250 = smul.addr %s247, 11
      %s251 = sadd.s32 %s249, %s250
      %s252 = smul.addr %s251, 8
      %s253 = scalar_lea.vmem %s4, %s252
      %p254 = scmp.lt.s32.totalorder %s36, 0
      %s255 = scalar_select %p254, %s36, 0
      %s256 = smul.addr %s255, 8
      %s257 = scalar_lea.vmem %s5, %s256
      %p258 = scmp.lt.s32.totalorder %s35, 1
      %s259 = scalar_select %p258, %s35, 1
      %p260 = scmp.lt.s32.totalorder %s36, 0
      %s261 = scalar_select %p260, %s36, 0
      %s262 = sadd.s32 %s261, %s259
      %s263 = smul.addr %s262, 8
      %s264 = scalar_lea.vmem %s6, %s263
      %v265 = vld [vmem:[%s245] sm:$0xff]
      %v266 = vxor.u32 %v265, 2147483648
      %v267 = vmul.f32 %v266, 1.442695
      %v268 = vpow.pop %v267
      %v269 = vadd.f32 %v268, 1.0
      %v270 = vrcp.pop %v269
      %v271 = vmul.f32 1.0, %v270
      %s272 = scalar_lea.vmem %s245, 8
      %v273 = vld [vmem:[%s272] sm:$0xff]
      %v274 = vxor.u32 %v273, 2147483648
      %v275 = vmul.f32 %v274, 1.442695
      %v276 = vpow.pop %v275
      %v277 = vadd.f32 %v276, 1.0
      %v278 = vrcp.pop %v277
      %v279 = vmul.f32 1.0, %v278
      %s280 = scalar_lea.vmem %s245, 16
      %v281 = vld [vmem:[%s280] sm:$0xff]
      %v282 = vmax.f32 %v281, -20.0
      %v283 = vmin.f32 %v282, 20.0
      %s284 = scalar_lea.vmem %s245, 24
      %v285 = vld [vmem:[%s284] sm:$0xff]
      %v286 = vmax.f32 %v285, -20.0
      %v287 = vmin.f32 %v286, 20.0
      %v288 = vld [vmem:[%s257] sm:$0xff]
      %v289 = vadd.f32 %v271, %v288
      %s290 = scalar_lea.vmem %s257, 8
      %v291 = vld [vmem:[%s290] sm:$0xff]
      %v292 = vadd.f32 %v279, %v291
      %v293 = vmul.f32 %v283, 1.442695
      %v294 = vpow.pop %v293
      %s295 = scalar_lea.vmem %s257, 16
      %v296 = vld [vmem:[%s295] sm:$0xff]
      %v297 = vmul.f32 %v294, %v296
      %v298 = vmul.f32 %v287, 1.442695
      %v299 = vpow.pop %v298
      %s300 = scalar_lea.vmem %s257, 24
      %v301 = vld [vmem:[%s300] sm:$0xff]
      %v302 = vmul.f32 %v299, %v301
      %v303 = vmul.f32 %v297, 0.5
      %v304 = vsub.f32 %v289, %v303
      %v305 = vadd.f32 %v289, %v303
      %v306 = vmul.f32 %v302, 0.5
      %v307 = vsub.f32 %v292, %v306
      %v308 = vadd.f32 %v292, %v306
      %v309 = vmul.f32 %v297, %v302
      %310 = vst [vmem:[#allocation2] sm:$0xff] 0.0
      %s311 = sld [smem:[#allocation5 + %s35]]
      // While loop
      $region33: #{_origin_loss_impl.1} parent=31 // loop_pre_header
        _
      $region34: #{_origin_loss_impl.1} parent=31 // loop_header
        %s313 = sphi 0, %s315
        %p314 = scmp.ge.s32.totalorder %s313, %s311
      $region35: #{_origin_loss_impl.1} parent=31 // loop_header_branch
        %317 = sbr.rel (%p314) target = $region39
      $region36: #{_origin_loss_impl.1} parent=31 // loop_body
        %s318 = smul.u32 %s313, 5
        %s319 = sshra.s32 %s318, 7
        %s320 = sand.u32 %s318, 127
        %s321 = sadd.s32 %s319, %s35
        %s322 = smul.u32 %s321, 128
        %s323 = sshra.s32 %s318, 7
        %s324 = sand.u32 %s318, 127
        %s325 = sadd.s32 %s322, %s324
        %s326 = sld [smem:[#allocation4 + %s325]]
        %s327 = sadd.s32 %s318, 1
        %s328 = sshra.s32 %s327, 7
        %s329 = sand.u32 %s327, 127
        %s330 = sadd.s32 %s328, %s35
        %s331 = smul.u32 %s330, 128
        %s332 = sshra.s32 %s327, 7
        %s333 = sand.u32 %s327, 127
        %s334 = sadd.s32 %s331, %s333
        %s335 = sld [smem:[#allocation4 + %s334]]
        %s336 = sadd.s32 %s318, 2
        %s337 = sshra.s32 %s336, 7
        %s338 = sand.u32 %s336, 127
        %s339 = sadd.s32 %s337, %s35
        %s340 = smul.u32 %s339, 128
        %s341 = sshra.s32 %s336, 7
        %s342 = sand.u32 %s336, 127
        %s343 = sadd.s32 %s340, %s342
        %s344 = sld [smem:[#allocation4 + %s343]]
        %s345 = sadd.s32 %s318, 3
        %s346 = sshra.s32 %s345, 7
        %s347 = sand.u32 %s345, 127
        %s348 = sadd.s32 %s346, %s35
        %s349 = smul.u32 %s348, 128
        %s350 = sshra.s32 %s345, 7
        %s351 = sand.u32 %s345, 127
        %s352 = sadd.s32 %s349, %s351
        %s353 = sld [smem:[#allocation4 + %s352]]
        %s354 = sadd.s32 %s318, 4
        %s355 = sshra.s32 %s354, 7
        %s356 = sand.u32 %s354, 127
        %s357 = sadd.s32 %s355, %s35
        %s358 = smul.u32 %s357, 128
        %s359 = sshra.s32 %s354, 7
        %s360 = sand.u32 %s354, 127
        %s361 = sadd.s32 %s358, %s360
        %s362 = sld [smem:[#allocation4 + %s361]]
        %v363 = vstv %s344
        %v364 = vmin.f32 %v305, %v363
        %v365 = vstv %s326
        %v366 = vmax.f32 %v304, %v365
        %v367 = vsub.f32 %v364, %v366
        %v368 = vmax.f32 %v367, 0.0
        %v369 = vstv %s353
        %v370 = vmin.f32 %v308, %v369
        %v371 = vstv %s335
        %v372 = vmax.f32 %v307, %v371
        %v373 = vsub.f32 %v370, %v372
        %v374 = vmax.f32 %v373, 0.0
        %v375 = vmul.f32 %v368, %v374
        %v376 = vstv %s362
        %v377 = vadd.f32 %v376, %v309
        %v378 = vsub.f32 %v377, %v375
        %v379 = vrcp.pop %v378
        %v380 = vmul.f32 %v375, %v379
        %v381 = vld [vmem:[#allocation2] sm:$0xff]
        %v382 = vmax.f32 %v381, %v380
        %383 = vst [vmem:[#allocation2] sm:$0xff] %v382
      $region37: #{_origin_loss_impl.1} parent=31 // loop_footer
        %s315 = sadd.s32 %s313, 1
      $region38: #{_origin_loss_impl.1} parent=31 // loop_footer_branch
        %312 = sbr.rel target = $region34
      $region39: #{_origin_loss_impl.1} parent=31 // loop_exit
        _
      %s384 = scalar_lea.vmem %s253, 32
      %v385 = vld [vmem:[%s384] sm:$0xff]
      %v386 = vld [vmem:[#allocation2] sm:$0xff]
      %vm387 = vcmp.gt.f32.partialorder %v386, 0.5
      %s388 = scalar_lea.vmem %s253, 72
      %v389 = vld [vmem:[%s388] sm:$0xff]
      %v390 = vsel %vm387, 0.0, %v389
      %s391 = scalar_lea.vmem %s245, 32
      %v392 = vld [vmem:[%s391] sm:$0xff]
      %v393 = vmax.f32 %v392, -16.118095
      %v394 = vmin.f32 %v393, 16.118095
      %v395 = vmul.f32 %v394, 1.442695
      %v396 = vpow.pop %v395
      %v397 = vadd.f32 %v396, 1.0
      %v398 = vlog2.pop %v397
      %v399 = vmul.f32 %v398, 0.6931472
      %v400 = vmul.f32 -0.5, %v396
      %v401 = vadd.f32 %v400, 1.0
      %v402 = vmul.f32 %v401, %v396
      %v403 = vand.u32 2147483647, %v396
      %vm404 = vcmp.lt.f32.partialorder %v403, 0.0004427343
      %v405 = vsel %vm404, %v402, %v399
      %v406 = vmul.f32 %v385, %v394
      %v407 = vsub.f32 %v405, %v406
      %v408 = vadd.f32 %v385, %v390
      %v409 = vmul.f32 %v407, %v408
      %410 = vadd.xlane.f32.xlu0 %v409
      %v411 = vpop.xlane.xlu0 %410
      %v412 = vrot.slane %v411, 4
      %v413 = vadd.f32 %v411, %v412
      %v414 = vrot.slane %v413, 2
      %v415 = vadd.f32 %v413, %v414
      %v416 = vrot.slane %v415, 1
      %v417 = vadd.f32 %v415, %v416
      %s418 = vtos %v417
      %419 = vadd.xlane.f32.xlu0 %v385
      %v420 = vpop.xlane.xlu0 %419
      %v421 = vrot.slane %v420, 4
      %v422 = vadd.f32 %v420, %v421
      %v423 = vrot.slane %v422, 2
      %v424 = vadd.f32 %v422, %v423
      %v425 = vrot.slane %v424, 1
      %v426 = vadd.f32 %v424, %v425
      %s427 = vtos %v426
      %v428 = vlaneseq
      %v429 = vand.u32 %v428, 127
      %vm430 = vcmp.eq.s32.totalorder %v429, 0
      %vm431 = vcmp.eq.s32.totalorder %v429, 1
      %v432 = vstv %s427
      %v433 = vsel %vm431, %v432, 0.0
      %v434 = vstv %s418
      %v435 = vsel %vm430, %v434, %v433
      %436 = vst [vmem:[%s264] sm:$0xff] %v435
      %s437 = sshra.s32 %s36, 7
      %s438 = sand.u32 %s36, 127
      %s439 = sadd.s32 %s437, %s35
      %s440 = smul.u32 %s439, 128
      %s441 = sshra.s32 %s36, 7
      %s442 = sand.u32 %s36, 127
      %s443 = sadd.s32 %s440, %s442
      %s444 = sld [smem:[#allocation6 + %s443]]
      %p445 = scmp.gt.s32.totalorder %s444, 0
      // Predicated region
      $region40: #{_origin_loss_impl.1} parent=31 // pred_check
        %p446 = pneg %p445
      $region41: #{_origin_loss_impl.1} parent=31 // pred_check_branch
        %448 = sbr.rel (%p446) target = $region43
      $region42: #{_origin_loss_impl.1} parent=31 // pred_region
        %v449 = vld [vmem:[%s253] sm:$0xff]
        %s450 = scalar_lea.vmem %s253, 8
        %v451 = vld [vmem:[%s450] sm:$0xff]
        %s452 = scalar_lea.vmem %s253, 16
        %v453 = vld [vmem:[%s452] sm:$0xff]
        %s454 = scalar_lea.vmem %s253, 24
        %v455 = vld [vmem:[%s454] sm:$0xff]
        %s456 = scalar_lea.vmem %s253, 80
        %v457 = vld [vmem:[%s456] sm:$0xff]
        %v458 = vsub.f32 2.0, %v457
        %v459 = vmul.f32 %v453, 0.5
        %v460 = vsub.f32 %v449, %v459
        %v461 = vadd.f32 %v449, %v459
        %v462 = vmul.f32 %v455, 0.5
        %v463 = vsub.f32 %v451, %v462
        %v464 = vadd.f32 %v451, %v462
        %v465 = vmin.f32 %v305, %v461
        %v466 = vmax.f32 %v304, %v460
        %v467 = vsub.f32 %v465, %v466
        %v468 = vmax.f32 %v467, 0.0
        %v469 = vmin.f32 %v308, %v464
        %v470 = vmax.f32 %v307, %v463
        %v471 = vsub.f32 %v469, %v470
        %v472 = vmax.f32 %v471, 0.0
        %v473 = vmul.f32 %v468, %v472
        %v474 = vmul.f32 %v453, %v455
        %v475 = vadd.f32 %v309, %v474
        %v476 = vsub.f32 %v475, %v473
        %v477 = vmax.f32 %v476, 1e-06
        %v478 = vrcp.pop %v477
        %v479 = vmul.f32 %v473, %v478
        %v480 = vsub.f32 %v289, %v449
        %v481 = vmul.f32 %v480, %v480
        %v482 = vsub.f32 %v292, %v451
        %v483 = vmul.f32 %v482, %v482
        %v484 = vadd.f32 %v481, %v483
        %v485 = vmax.f32 %v305, %v461
        %v486 = vmin.f32 %v304, %v460
        %v487 = vsub.f32 %v485, %v486
        %v488 = vmax.f32 %v487, 0.0
        %v489 = vmax.f32 %v308, %v464
        %v490 = vmin.f32 %v307, %v463
        %v491 = vsub.f32 %v489, %v490
        %v492 = vmax.f32 %v491, 0.0
        %v493 = vmul.f32 %v488, %v488
        %v494 = vmul.f32 %v492, %v492
        %v495 = vadd.f32 %v493, %v494
        %v496 = vmax.f32 %v495, 1e-06
        %v497 = vrcp.pop %v496
        %v498 = vmul.f32 %v484, %v497
        %v499 = vsub.f32 %v479, %v498
        %v500 = vmax.f32 %v302, 1e-06
        %v501 = vrcp.pop %v500
        %v502 = vmul.f32 %v297, %v501
        %vm503 = vcmp.gt.f32.partialorder %v502, 1.0
        %v504 = vmax.f32 %v502, 1e-30
        %v505 = vrcp.pop %v504
        %v506 = vsel %vm503, %v505, %v502
        %v507 = vmul.f32 %v506, %v506
        %v508 = vmul.f32 %v507, -0.0117212
        %v509 = vadd.f32 %v508, 0.05265332
        %v510 = vmul.f32 %v507, %v509
        %v511 = vadd.f32 %v510, -0.11643287
        %v512 = vmul.f32 %v507, %v511
        %v513 = vadd.f32 %v512, 0.19354346
        %v514 = vmul.f32 %v507, %v513
        %v515 = vadd.f32 %v514, -0.33262348
        %v516 = vmul.f32 %v507, %v515
        %v517 = vadd.f32 %v516, 0.99997723
        %v518 = vmul.f32 %v506, %v517
        %v519 = vsub.f32 1.5707964, %v518
        %v520 = vsel %vm503, %v519, %v518
        %v521 = vmax.f32 %v455, 1e-06
        %v522 = vrcp.pop %v521
        %v523 = vmul.f32 %v453, %v522
        %vm524 = vcmp.gt.f32.partialorder %v523, 1.0
        %v525 = vmax.f32 %v523, 1e-30
        %v526 = vrcp.pop %v525
        %v527 = vsel %vm524, %v526, %v523
        %v528 = vmul.f32 %v527, %v527
        %v529 = vmul.f32 %v528, -0.0117212
        %v530 = vadd.f32 %v529, 0.05265332
        %v531 = vmul.f32 %v528, %v530
        %v532 = vadd.f32 %v531, -0.11643287
        %v533 = vmul.f32 %v528, %v532
        %v534 = vadd.f32 %v533, 0.19354346
        %v535 = vmul.f32 %v528, %v534
        %v536 = vadd.f32 %v535, -0.33262348
        %v537 = vmul.f32 %v528, %v536
        %v538 = vadd.f32 %v537, 0.99997723
        %v539 = vmul.f32 %v527, %v538
        %v540 = vsub.f32 1.5707964, %v539
        %v541 = vsel %vm524, %v540, %v539
        %v542 = vsub.f32 %v520, %v541
        %v543 = vmul.f32 %v542, %v542
        %v544 = vmul.f32 %v543, 0.40528473
        %v545 = vsub.f32 1.0, %v479
        %v546 = vadd.f32 %v545, %v544
        %v547 = vmax.f32 %v546, 1e-06
        %v548 = vrcp.pop %v547
        %v549 = vmul.f32 %v544, %v548
        %v550 = vmul.f32 %v549, %v544
        %v551 = vsub.f32 %v499, %v550
        %s552 = scalar_lea.vmem %s253, 40
        %v553 = vld [vmem:[%s552] sm:$0xff]
        %s554 = scalar_lea.vmem %s245, 40
        %v555 = vld [vmem:[%s554] sm:$0xff]
        %v556 = vmax.f32 %v555, -16.118095
        %v557 = vmin.f32 %v556, 16.118095
        %v558 = vmul.f32 %v557, 1.442695
        %v559 = vpow.pop %v558
        %v560 = vadd.f32 %v559, 1.0
        %v561 = vlog2.pop %v560
        %v562 = vmul.f32 %v561, 0.6931472
        %v563 = vmul.f32 -0.5, %v559
        %v564 = vadd.f32 %v563, 1.0
        %v565 = vmul.f32 %v564, %v559
        %v566 = vand.u32 2147483647, %v559
        %vm567 = vcmp.lt.f32.partialorder %v566, 0.0004427343
        %v568 = vsel %vm567, %v565, %v562
        %v569 = vmul.f32 %v553, %v557
        %v570 = vsub.f32 %v568, %v569
        %v571 = vadd.f32 %v570, 0.0
        %s572 = scalar_lea.vmem %s253, 48
        %v573 = vld [vmem:[%s572] sm:$0xff]
        %s574 = scalar_lea.vmem %s245, 48
        %v575 = vld [vmem:[%s574] sm:$0xff]
        %v576 = vmax.f32 %v575, -16.118095
        %v577 = vmin.f32 %v576, 16.118095
        %v578 = vmul.f32 %v577, 1.442695
        %v579 = vpow.pop %v578
        %v580 = vadd.f32 %v579, 1.0
        %v581 = vlog2.pop %v580
        %v582 = vmul.f32 %v581, 0.6931472
        %v583 = vmul.f32 -0.5, %v579
        %v584 = vadd.f32 %v583, 1.0
        %v585 = vmul.f32 %v584, %v579
        %v586 = vand.u32 2147483647, %v579
        %vm587 = vcmp.lt.f32.partialorder %v586, 0.0004427343
        %v588 = vsel %vm587, %v585, %v582
        %v589 = vmul.f32 %v573, %v577
        %v590 = vsub.f32 %v588, %v589
        %v591 = vadd.f32 %v571, %v590
        %s592 = scalar_lea.vmem %s253, 56
        %v593 = vld [vmem:[%s592] sm:$0xff]
        %s594 = scalar_lea.vmem %s245, 56
        %v595 = vld [vmem:[%s594] sm:$0xff]
        %v596 = vmax.f32 %v595, -16.118095
        %v597 = vmin.f32 %v596, 16.118095
        %v598 = vmul.f32 %v597, 1.442695
        %v599 = vpow.pop %v598
        %v600 = vadd.f32 %v599, 1.0
        %v601 = vlog2.pop %v600
        %v602 = vmul.f32 %v601, 0.6931472
        %v603 = vmul.f32 -0.5, %v599
        %v604 = vadd.f32 %v603, 1.0
        %v605 = vmul.f32 %v604, %v599
        %v606 = vand.u32 2147483647, %v599
        %vm607 = vcmp.lt.f32.partialorder %v606, 0.0004427343
        %v608 = vsel %vm607, %v605, %v602
        %v609 = vmul.f32 %v593, %v597
        %v610 = vsub.f32 %v608, %v609
        %v611 = vadd.f32 %v591, %v610
        %s612 = scalar_lea.vmem %s253, 64
        %v613 = vld [vmem:[%s612] sm:$0xff]
        %s614 = scalar_lea.vmem %s245, 64
        %v615 = vld [vmem:[%s614] sm:$0xff]
        %v616 = vmax.f32 %v615, -16.118095
        %v617 = vmin.f32 %v616, 16.118095
        %v618 = vmul.f32 %v617, 1.442695
        %v619 = vpow.pop %v618
        %v620 = vadd.f32 %v619, 1.0
        %v621 = vlog2.pop %v620
        %v622 = vmul.f32 %v621, 0.6931472
        %v623 = vmul.f32 -0.5, %v619
        %v624 = vadd.f32 %v623, 1.0
        %v625 = vmul.f32 %v624, %v619
        %v626 = vand.u32 2147483647, %v619
        %vm627 = vcmp.lt.f32.partialorder %v626, 0.0004427343
        %v628 = vsel %vm627, %v625, %v622
        %v629 = vmul.f32 %v613, %v617
        %v630 = vsub.f32 %v628, %v629
        %v631 = vadd.f32 %v611, %v630
        %v632 = vsub.f32 1.0, %v551
        %v633 = vmul.f32 %v632, %v458
        %v634 = vadd.f32 %v633, %v631
        %v635 = vmul.f32 %v634, %v385
        %636 = vadd.xlane.f32.xlu0 %v635
        %v637 = vpop.xlane.xlu0 %636
        %v638 = vrot.slane %v637, 4
        %v639 = vadd.f32 %v637, %v638
        %v640 = vrot.slane %v639, 2
        %v641 = vadd.f32 %v639, %v640
        %v642 = vrot.slane %v641, 1
        %v643 = vadd.f32 %v641, %v642
        %s644 = vtos %v643
        %v645 = vld [vmem:[%s264] sm:$0xff]
        %v646 = vstv %s644
        %v647 = vsel %vm430, %v646, 0.0
        %v648 = vadd.f32 %v645, %v647
        %649 = vst [vmem:[%s264] sm:$0xff] %v648
      $region43: #{_origin_loss_impl.1} parent=31 // pred_fallthru
        _
      %p650 = scmp.lt.s32.totalorder %s35, 1
      %s651 = scalar_select %p650, %s35, 1
      %p652 = scmp.lt.s32.totalorder %s36, 0
      %s653 = scalar_select %p652, %s36, 0
      %s654 = sadd.s32 %s653, %s651
      %s655 = smul.addr %s654, 8
      %s656 = scalar_lea.vmem %s6, %s655
      // Predicated region
      $region44: #{_origin_loss_impl.1} parent=31 // pred_check
        %p657 = pneg %p145
      $region45: #{_origin_loss_impl.1} parent=31 // pred_check_branch
        %659 = sbr.rel (%p657) target = $region47
      $region46: #{_origin_loss_impl.1} parent=31 // pred_region
        _
      $region47: #{_origin_loss_impl.1} parent=31 // pred_fallthru
        _
    $region32: #{_origin_loss_impl.1} parent=5 // pred_fallthru
      _
    %p660 = scmp.le.s32.totalorder 2, %s26
    // Predicated region
    $region48: #{_origin_loss_impl.1} parent=5 // pred_check
      %p661 = pneg %p660
    $region49: #{_origin_loss_impl.1} parent=5 // pred_check_branch
      %663 = sbr.rel (%p661) target = $region51
    $region50: #{_origin_loss_impl.1} parent=5 // pred_region
      %s664 = ssub.s32 %s26, 2
      // Predicated region
      $region52: #{_origin_loss_impl.1} parent=50 // pred_check
        %p665 = pneg %p151
      $region53: #{_origin_loss_impl.1} parent=50 // pred_check_branch
        %667 = sbr.rel (%p665) target = $region55
      $region54: #{_origin_loss_impl.1} parent=50 // pred_region
        %p668 = scmp.lt.s32.totalorder %s37, 1
        %s669 = scalar_select %p668, %s37, 1
        %p670 = scmp.lt.s32.totalorder %s38, 0
        %s671 = scalar_select %p670, %s38, 0
        %s672 = sadd.s32 %s671, %s669
        %s673 = smul.addr %s672, 8
        %s674 = scalar_lea.vmem %s6, %s673
      $region55: #{_origin_loss_impl.1} parent=50 // pred_fallthru
        _
    $region51: #{_origin_loss_impl.1} parent=5 // pred_fallthru
      _
  $region6: #{_origin_loss_impl.1} parent=0 // loop_footer
    %s30 = sadd.s32 1, %s26
  $region7: #{_origin_loss_impl.1} parent=0 // loop_footer_branch
    %25 = sbr.rel target = $region3
  $region8: #{_origin_loss_impl.1} parent=0 // loop_exit
    _

</llo_original>
